<compile_context>
chip_gen: v7x
topology: tpu7x:2x2x1
jax: 0.10.0
libtpu: 0.0.40
codegen_flags: <defaults>
</compile_context>

<pallas_src>
import math
import functools

import jax
import jax.numpy as jnp
from jax import lax
from jax.experimental import pallas as pl
from jax.experimental.pallas import tpu as pltpu


_FLT_MAX = float(jnp.finfo(jnp.float32).max)


def _round_up(x: int, m: int) -> int:
    return ((x + m - 1) // m) * m


def _vmem_capacity_bytes() -> int:
    try:
        cap = int(getattr(pltpu.get_tpu_info(), "vmem_capacity_bytes", 0))
        if cap > 0:
            return cap
    except Exception:
        pass
    return 64 * 1024 * 1024   # conservative default (v7x per-TC VMEM)


def _pick_head_group(h: int, d: int) -> int:
    """Heads per grid step: divides h, targets G*d ~ 128 lanes, keeps the W BlockSpec
    sublane extent (G*d) a multiple of 8 (or falls back to the full extent)."""
    target = max(1, 128 // max(d, 1))
    best = 0
    for g in range(1, h + 1):
        if h % g == 0 and g <= target and (g * d) % 8 == 0:
            best = g
    return best if best > 0 else h


def _choose_tq(n: int, tq_max: int) -> int:
    """q tile (multiple of 32) minimising padding waste, preferring larger tiles."""
    best_tq, best_pad = 32, _round_up(n, 32)
    for c in range(32, tq_max + 1, 32):
        pad = _round_up(n, c)
        if pad < best_pad or (pad == best_pad and c > best_tq):
            best_tq, best_pad = c, pad
    return best_tq


# ---------------------------------------------------------------------------
# Fused flash-attention + output-projection kernel
# grid = (batch, q_tile, head_group, kv_tile)
# ---------------------------------------------------------------------------
def _fused_attn_proj_kernel(*refs, scale, is_causal, has_mask, mask_2d,
                            n, m, m_pad, tq, tkv, G):
    if has_mask:
        q_ref, k_ref, v_ref, w_ref, b_ref, mask_ref = refs[:6]
        o_ref, m_sc, l_sc, acc_sc, proj_sc = refs[6:]
    else:
        q_ref, k_ref, v_ref, w_ref, b_ref = refs[:5]
        mask_ref = None
        o_ref, m_sc, l_sc, acc_sc, proj_sc = refs[5:]

    qi = pl.program_id(1)
    hi = pl.program_id(2)
    kvi = pl.program_id(3)
    num_hg = pl.num_programs(2)
    num_kv = pl.num_programs(3)

    # Zero the cross-head-group projection accumulator once per (batch, q-tile).
    @pl.when((hi == 0) & (kvi == 0))
    def _():
        proj_sc[...] = jnp.zeros(proj_sc.shape, proj_sc.dtype)

    # Reset the online-softmax state at the start of each head-group's KV sweep.
    @pl.when(kvi == 0)
    def _():
        m_sc[...] = jnp.full(m_sc.shape, -jnp.inf, m_sc.dtype)
        l_sc[...] = jnp.zeros(l_sc.shape, l_sc.dtype)
        acc_sc[...] = jnp.zeros(acc_sc.shape, acc_sc.dtype)

    def compute():
        # Fold softmax scale into q: tq*d mults instead of a (tq,tkv) scale per step.
        q = q_ref[0] * scale          # (G, tq, d)  compute dtype
        k = k_ref[0]                  # (G, tkv, d)
        v = v_ref[0]                  # (G, tkv, d)

        # sim = (q*scale) @ k^T, accumulated in f32 on the MXU.
        s = jnp.einsum('gqd,gkd->gqk', q, k,
                       preferred_element_type=jnp.float32)   # (G, tq, tkv)

        # Masking (mask, if given, overrides causal — matches reference).
        if is_causal and not has_mask:
            row = qi * tq + lax.broadcasted_iota(jnp.int32, (tq, tkv), 0)
            col = kvi * tkv + lax.broadcasted_iota(jnp.int32, (tq, tkv), 1)
            s = jnp.where((col <= row + (m - n))[None], s, -_FLT_MAX)
        if has_mask:
            mblk = mask_ref[...] if mask_2d else mask_ref[0]       # (tq, tkv) int8
            s = jnp.where((mblk != 0)[None], s, -_FLT_MAX)
        if m_pad > m:
            # Padded KV columns -> -inf so exp() is exactly 0 and the fully-masked-row
            # degenerate case (uniform over the m real columns) still matches.
            col = kvi * tkv + lax.broadcasted_iota(jnp.int32, (tq, tkv), 1)
            s = jnp.where((col < m)[None], s, -jnp.inf)

        # Online softmax update (f32).
        m_prev = m_sc[...]
        m_new = jnp.maximum(m_prev, jnp.max(s, axis=-1, keepdims=True))
        alpha = jnp.exp(m_prev - m_new)
        p = jnp.exp(s - m_new)
        l_sc[...] = alpha * l_sc[...] + jnp.sum(p, axis=-1, keepdims=True)
        acc_sc[...] = alpha * acc_sc[...] + jnp.einsum(
            'gqk,gkd->gqd', p.astype(v.dtype), v,
            preferred_element_type=jnp.float32)
        m_sc[...] = m_new

    if is_causal and not has_mask:
        # Skip kv tiles that lie entirely above the causal diagonal.  kvi==0 always
        # runs so l never stays 0 (fully-masked rows fall back to uniform attention
        # over the first tile's real columns — only reachable when n > m).
        run = (kvi == 0) | (kvi * tkv <= qi * tq + (tq - 1) + (m - n))
        pl.when(run)(compute)
    else:
        compute()

    # Per-head-group epilogue: normalize (exact reciprocal) and fold this group into
    # the fused projection with one lane-filled (tq, G*d) x (G*d, out_f_pad) matmul.
    @pl.when(kvi == num_kv - 1)
    def _():
        o = acc_sc[...] * (1.0 / l_sc[...])                 # (G, tq, d) f32
        if G > 1:
            o_cat = jnp.concatenate(
                [o[g].astype(w_ref.dtype) for g in range(G)], axis=-1)
        else:
            o_cat = o[0].astype(w_ref.dtype)                # (tq, G*d)
        proj_sc[...] += jnp.dot(o_cat, w_ref[...],
                                preferred_element_type=jnp.float32)

    # Last head group: add bias and store the lane-dense (tq, out_f_pad) block once.
    @pl.when((hi == num_hg - 1) & (kvi == num_kv - 1))
    def _():
        o_ref[0] = (proj_sc[...] + b_ref[...].astype(jnp.float32)).astype(o_ref.dtype)


# ---------------------------------------------------------------------------
# Wrapper: head split, padding, generation-aware tiling, pallas_call
# ---------------------------------------------------------------------------
def attention_base_forward(q, k, v, w, bias, *, num_heads, head_features, scale,
                           mask=None, is_causal=False, compute_dtype=jnp.bfloat16,
                           tq_max=None, tkv_max=None):
    b, n, _ = q.shape
    m = k.shape[1]
    h, d = num_heads, head_features
    out_f = w.shape[1]
    out_dtype = q.dtype
    out_itemsize = jnp.dtype(out_dtype).itemsize

    compute_dtype = jnp.dtype(q.dtype if compute_dtype is None else compute_dtype)
    itemsize = compute_dtype.itemsize

    has_mask = mask is not None
    mask_2d = has_mask and (mask.ndim == 2)

    # ---- generation-aware tile selection -------------------------------------
    capacity = _vmem_capacity_bytes()
    if tq_max is None:
        # v5e/v6e (128 MiB VMEM): bigger q tiles halve the K/V re-stream traffic.
        tq_max = 512 if capacity >= 96 * 1024 * 1024 else 256
    if tkv_max is None:
        tkv_max = 512

    G = _pick_head_group(h, d)
    out_f_pad = _round_up(out_f, 128)            # lane-dense projection / output

    tkv = min(tkv_max, _round_up(m, 128))
    tq = _choose_tq(n, tq_max)

    # Keep >= 2 parallel grid steps so a 2-TensorCore chip (v7x) is not half idle.
    if capacity <= 96 * 1024 * 1024:
        while b * (-(-n // tq)) < 2 and tq > 32:
            tq = max(32, (tq // 2) // 32 * 32)

    def vmem_est(tq_, tkv_, g_):
        blocks = (g_ * tq_ * d * itemsize                 # q block
                  + 2 * g_ * tkv_ * d * itemsize          # k, v blocks
                  + g_ * d * out_f_pad * itemsize         # W slice
                  + out_f_pad * 4                         # bias
                  + (tq_ * tkv_ if has_mask else 0)       # int8 mask
                  + tq_ * out_f_pad * out_itemsize)       # output block
        scratch = (2 * g_ * tq_ * 128 + g_ * tq_ * d + tq_ * out_f_pad) * 4
        temps = 4 * g_ * tq_ * tkv_ * 4                   # (G, tq, tkv) f32 temporaries
        return 2 * blocks + scratch + temps + (1 << 20)

    budget = int(0.4 * capacity)
    while vmem_est(tq, tkv, G) > budget:
        if tkv > 128:
            tkv = max(128, (tkv // 2) // 128 * 128)
        elif tq > 32:
            tq = max(32, (tq // 2) // 32 * 32)
        elif G > 1 and d % 8 == 0:
            G = 1
        else:
            break

    n_pad = _round_up(n, tq)
    m_pad = _round_up(m, tkv)

    # ---- operand preparation ---------------------------------------------------
    def split_pad(x, seq_pad):
        bb, s, _ = x.shape
        xh = jnp.transpose(x.astype(compute_dtype).reshape(bb, s, h, d), (0, 2, 1, 3))
        if seq_pad > s:
            xh = jnp.pad(xh, ((0, 0), (0, 0), (0, seq_pad - s), (0, 0)))
        return xh                                         # (b, h, seq_pad, d)

    qh = split_pad(q, n_pad)
    kh = split_pad(k, m_pad)
    vh = split_pad(v, m_pad)

    w2 = w.astype(compute_dtype)                          # bf16 W (f32 accumulation)
    if out_f_pad > out_f:
        w2 = jnp.pad(w2, ((0, 0), (0, out_f_pad - out_f)))
    b2 = bias.astype(jnp.float32).reshape(1, out_f)
    if out_f_pad > out_f:
        b2 = jnp.pad(b2, ((0, 0), (0, out_f_pad - out_f)))

    # ---- specs -------------------------------------------------------------------
    if is_causal and not has_mask:
        def kv_index_map(bi, qi, hi, ki):
            # Clamp so the skipped (above-diagonal) tiles' DMAs dedupe.
            last = (qi * tq + (tq - 1) + (m - n)) // tkv
            ki = jnp.minimum(ki, jnp.maximum(last, 0))
            return (bi, hi, ki, 0)
    else:
        def kv_index_map(bi, qi, hi, ki):
            return (bi, hi, ki, 0)

    in_specs = [
        pl.BlockSpec((1, G, tq, d), lambda bi, qi, hi, ki: (bi, hi, qi, 0)),
        pl.BlockSpec((1, G, tkv, d), kv_index_map),
        pl.BlockSpec((1, G, tkv, d), kv_index_map),
        pl.BlockSpec((G * d, out_f_pad), lambda bi, qi, hi, ki: (hi, 0)),
        pl.BlockSpec((1, out_f_pad), lambda bi, qi, hi, ki: (0, 0)),
    ]
    inputs = [qh, kh, vh, w2, b2]

    mask_i8 = None
    if has_mask:
        mask_i8 = mask.astype(jnp.int8)                   # 1 byte per element
        if mask_2d:
            # Keep 2-D masks un-broadcast: index_map ignores the batch index.
            mask_i8 = jnp.pad(mask_i8, ((0, n_pad - n), (0, m_pad - m)))
            inputs.append(mask_i8)
            in_specs.append(
                pl.BlockSpec((tq, tkv), lambda bi, qi, hi, ki: (qi, ki)))
        else:
            mask_i8 = jnp.pad(mask_i8, ((0, 0), (0, n_pad - n), (0, m_pad - m)))
            inputs.append(mask_i8)
            in_specs.append(
                pl.BlockSpec((1, tq, tkv), lambda bi, qi, hi, ki: (bi, qi, ki)))

    out_shape = jax.ShapeDtypeStruct((b, n_pad, out_f_pad), out_dtype)
    out_spec = pl.BlockSpec((1, tq, out_f_pad), lambda bi, qi, hi, ki: (bi, qi, 0))

    grid = (b, n_pad // tq, h // G, m_pad // tkv)

    scratch_shapes = [
        pltpu.VMEM((G, tq, 1), jnp.float32),      # running max
        pltpu.VMEM((G, tq, 1), jnp.float32),      # running sum
        pltpu.VMEM((G, tq, d), jnp.float32),      # per-head-group attention accumulator
        pltpu.VMEM((tq, out_f_pad), jnp.float32), # fused projection accumulator
    ]

    kern = functools.partial(
        _fused_attn_proj_kernel, scale=float(scale), is_causal=bool(is_causal),
        has_mask=has_mask, mask_2d=mask_2d, n=n, m=m, m_pad=m_pad,
        tq=tq, tkv=tkv, G=G)

    # Advisory cost estimate (QK^T + PV + fused projection).
    flops = 4.0 * b * h * n_pad * m_pad * d + 2.0 * b * n_pad * h * d * out_f_pad
    bytes_accessed = ((qh.size + kh.size + vh.size) * itemsize
                      + w2.size * itemsize + b2.size * 4
                      + (mask_i8.size if has_mask else 0)
                      + b * n_pad * out_f_pad * out_itemsize)
    cost = pl.CostEstimate(flops=int(flops),
                           transcendentals=int(b * h * n_pad * m_pad),
                           bytes_accessed=int(bytes_accessed))

    # Generation-aware VMEM limit: never request more than 75% of physical capacity.
    vmem_limit = int(min(max(2 * vmem_est(tq, tkv, G), 32 * 1024 * 1024),
                         int(0.75 * capacity)))

    out = pl.pallas_call(
        kern,
        out_shape=out_shape,
        grid=grid,
        in_specs=in_specs,
        out_specs=out_spec,
        scratch_shapes=scratch_shapes,
        compiler_params=pltpu.CompilerParams(
            dimension_semantics=("parallel", "parallel", "arbitrary", "arbitrary"),
            vmem_limit_bytes=vmem_limit),
        cost_estimate=cost,
    )(*inputs)

    return out[:, :n, :out_f]


# ---------------------------------------------------------------------------
# Module
# ---------------------------------------------------------------------------
class AttentionBase:
    """JAX/Pallas port of stable_audio_tools.models.adp.AttentionBase."""

    def __init__(self, features, *, head_features, num_heads, out_features=None,
                 key=None, compute_dtype=jnp.bfloat16):
        self.scale = head_features ** (-0.5)
        self.num_heads = num_heads
        self.head_features = head_features
        mid_features = head_features * num_heads
        self.mid_features = mid_features
        self.out_features = features if out_features is None else out_features
        self.compute_dtype = compute_dtype
        key = jax.random.PRNGKey(0) if key is None else key
        kw, kb = jax.random.split(key)
        # nn.Linear default init: U(-1/sqrt(fan_in), 1/sqrt(fan_in)); W stored (mid, out).
        bound = 1.0 / math.sqrt(mid_features)
        self.w = jax.random.uniform(kw, (mid_features, self.out_features),
                                    jnp.float32, -bound, bound)
        self.b = jax.random.uniform(kb, (self.out_features,),
                                    jnp.float32, -bound, bound)
        # TODO(synk): the CUDA sdp_kernel/use_flash config of the original module is
        # GPU-only plumbing; this port always uses the fused Pallas attention path.

    def __call__(self, q, k, v, mask=None, is_causal=False, compute_dtype=None):
        cd = self.compute_dtype if compute_dtype is None else compute_dtype
        return attention_base_forward(
            q, k, v, self.w, self.b,
            num_heads=self.num_heads, head_features=self.head_features,
            scale=self.scale, mask=mask, is_causal=is_causal, compute_dtype=cd)


# ---------------------------------------------------------------------------
# Pure-JAX reference (mirrors the PyTorch non-flash path)
# ---------------------------------------------------------------------------
def _reference(module, q, k, v, mask=None, is_causal=False):
    b, n, _ = q.shape
    h, d = module.num_heads, module.head_features
    split = lambda x: jnp.transpose(x.reshape(x.shape[0], x.shape[1], h, d), (0, 2, 1, 3))
    qh, kh, vh = split(q), split(k), split(v)
    sim = jnp.einsum("bhnd,bhmd->bhnm", qh, kh) * module.scale
    i, j = sim.shape[-2], sim.shape[-1]
    if is_causal and mask is None:
        row = jnp.arange(i)[:, None]
        col = jnp.arange(j)[None, :]
        mask = jnp.broadcast_to((col <= row + (j - i))[None], (b, i, j))
    if mask is not None:
        if mask.ndim == 2:
            mask = jnp.broadcast_to(mask[None], (b, i, j))
        sim = jnp.where(mask[:, None, :, :], sim, -jnp.finfo(jnp.float32).max)
    attn = jax.nn.softmax(sim.astype(jnp.float32), axis=-1)
    out = jnp.einsum("bhnm,bhmd->bhnd", attn, vh)
    out = jnp.transpose(out, (0, 2, 1, 3)).reshape(b, n, h * d)
    return out @ module.w + module.b[None, None, :]


if __name__ == "__main__":
    batch, seq = 2, 8
    num_heads, head_features = 2, 16
    features = num_heads * head_features          # 32

    key = jax.random.PRNGKey(0)
    kq, kk, kv_, kp, km = jax.random.split(key, 5)
    q = jax.random.normal(kq, (batch, seq, features), jnp.float32)
    k = jax.random.normal(kk, (batch, seq, features), jnp.float32)
    v = jax.random.normal(kv_, (batch, seq, features), jnp.float32)

    attn = AttentionBase(features, head_features=head_features,
                         num_heads=num_heads, key=kp)

    mask3 = jax.random.bernoulli(km, 0.7, (batch, seq, seq)).at[:, :, 0].set(True)
    mask2 = mask3[0]

    cases = [
        dict(),                    # plain
        dict(is_causal=True),      # causal (derived in-kernel, tiles skipped)
        dict(mask=mask3),          # explicit 3-D boolean mask
        dict(mask=mask2),          # explicit 2-D boolean mask (kept un-broadcast)
    ]

    # Exact-math check: f32 compute path, tight tolerance.
    for kw in cases:
        out = jax.block_until_ready(attn(q, k, v, compute_dtype=jnp.float32, **kw))
        ref = _reference(attn, q, k, v, **kw)
        assert out.shape == (batch, seq, features)
        err = float(jnp.max(jnp.abs(out - ref)))
        assert jnp.allclose(out, ref, atol=1.5e-2, rtol=1.5e-2), (kw, err)

    # Default fast path: bf16 matmuls with f32 accumulation -> bf16-level tolerance.
    for kw in cases:
        out = jax.block_until_ready(attn(q, k, v, **kw))
        ref = _reference(attn, q, k, v, **kw)
        err = float(jnp.max(jnp.abs(out - ref)))
        assert jnp.allclose(out, ref, atol=7.5e-2, rtol=7.5e-2), (kw, err)

    print("KERNEL_OK")
</pallas_src>

<mosaic_0001>
module attributes {stable_mosaic.version = 11 : i64} {
  func.func @_fused_attn_proj_kernel(%arg0: i32, %arg1: i32, %arg2: i32, %arg3: i32, %arg4: memref<1x2x32x16xf32, #tpu.memory_space<vmem>>, %arg5: memref<1x2x128x16xf32, #tpu.memory_space<vmem>>, %arg6: memref<1x2x128x16xf32, #tpu.memory_space<vmem>>, %arg7: memref<32x128xf32, #tpu.memory_space<vmem>>, %arg8: memref<1x128xf32, #tpu.memory_space<vmem>>, %arg9: memref<1x32x128xf32, #tpu.memory_space<vmem>>, %arg10: memref<2x32x1xf32, #tpu.memory_space<vmem>>, %arg11: memref<2x32x1xf32, #tpu.memory_space<vmem>>, %arg12: memref<2x32x16xf32, #tpu.memory_space<vmem>>, %arg13: memref<32x128xf32, #tpu.memory_space<vmem>>) attributes {dimension_semantics = [#tpu.dimension_semantics<parallel>, #tpu.dimension_semantics<parallel>, #tpu.dimension_semantics<arbitrary>, #tpu.dimension_semantics<arbitrary>], iteration_bounds = array<i64: 2, 1, 1, 1>, scalar_prefetch = 0 : i64, scratch_operands = 4 : i64, tpu.core_type = #tpu.core_type<tc>, window_params = [{transform_indices = @transform_0, window_bounds = array<i64: 1, 2, 32, 16>}, {transform_indices = @transform_1, window_bounds = array<i64: 1, 2, 128, 16>}, {transform_indices = @transform_2, window_bounds = array<i64: 1, 2, 128, 16>}, {transform_indices = @transform_3, window_bounds = array<i64: 32, 128>}, {pipeline_mode = #tpu.pipeline_mode<synchronous>, transform_indices = @transform_4, window_bounds = array<i64: 1, 128>}, {transform_indices = @transform_5, window_bounds = array<i64: 1, 32, 128>}]} {
    %c0_i32 = arith.constant 0 : i32
    %0 = arith.cmpi eq, %arg2, %c0_i32 : i32
    %c0_i32_0 = arith.constant 0 : i32
    %1 = arith.cmpi eq, %arg3, %c0_i32_0 : i32
    %2 = arith.andi %0, %1 : i1
    %3 = arith.extui %2 : i1 to i32
    %c0_i32_1 = arith.constant 0 : i32
    %4 = arith.cmpi ne, %3, %c0_i32_1 : i32
    scf.if %4 {
      %cst_43 = arith.constant 0.000000e+00 : f32
      %58 = vector.broadcast %cst_43 : f32 to vector<32x128xf32>
      %c0_44 = arith.constant 0 : index
      %c0_45 = arith.constant 0 : index
      %59 = vector.load %arg13[%c0_44, %c0_45] : memref<32x128xf32, #tpu.memory_space<vmem>>, vector<32x128xf32>
      tpu.vector_store %arg13[%c0_44, %c0_45], %58 {strides = array<i32>} : memref<32x128xf32, #tpu.memory_space<vmem>>, vector<32x128xf32>,
    } else {
    }
    %c0_i32_2 = arith.constant 0 : i32
    %5 = arith.cmpi eq, %arg3, %c0_i32_2 : i32
    %6 = arith.extui %5 : i1 to i32
    %c0_i32_3 = arith.constant 0 : i32
    %7 = arith.cmpi ne, %6, %c0_i32_3 : i32
    scf.if %7 {
      %cst_43 = arith.constant 0xFF800000 : f32
      %58 = vector.broadcast %cst_43 : f32 to vector<2x32x1xf32>
      %c0_44 = arith.constant 0 : index
      %c0_45 = arith.constant 0 : index
      %c0_46 = arith.constant 0 : index
      %59 = vector.load %arg10[%c0_44, %c0_45, %c0_46] : memref<2x32x1xf32, #tpu.memory_space<vmem>>, vector<2x32x1xf32>
      tpu.vector_store %arg10[%c0_44, %c0_45, %c0_46], %58 {strides = array<i32>} : memref<2x32x1xf32, #tpu.memory_space<vmem>>, vector<2x32x1xf32>,
      %cst_47 = arith.constant 0.000000e+00 : f32
      %60 = vector.broadcast %cst_47 : f32 to vector<2x32x1xf32>
      %c0_48 = arith.constant 0 : index
      %c0_49 = arith.constant 0 : index
      %c0_50 = arith.constant 0 : index
      %61 = vector.load %arg11[%c0_48, %c0_49, %c0_50] : memref<2x32x1xf32, #tpu.memory_space<vmem>>, vector<2x32x1xf32>
      tpu.vector_store %arg11[%c0_48, %c0_49, %c0_50], %60 {strides = array<i32>} : memref<2x32x1xf32, #tpu.memory_space<vmem>>, vector<2x32x1xf32>,
      %cst_51 = arith.constant 0.000000e+00 : f32
      %62 = vector.broadcast %cst_51 : f32 to vector<2x32x16xf32>
      %c0_52 = arith.constant 0 : index
      %c0_53 = arith.constant 0 : index
      %c0_54 = arith.constant 0 : index
      %63 = vector.load %arg12[%c0_52, %c0_53, %c0_54] : memref<2x32x16xf32, #tpu.memory_space<vmem>>, vector<2x32x16xf32>
      tpu.vector_store %arg12[%c0_52, %c0_53, %c0_54], %62 {strides = array<i32>} : memref<2x32x16xf32, #tpu.memory_space<vmem>>, vector<2x32x16xf32>,
    } else {
    }
    %c0 = arith.constant 0 : index
    %c0_4 = arith.constant 0 : index
    %c0_5 = arith.constant 0 : index
    %c0_6 = arith.constant 0 : index
    %8 = vector.load %arg4[%c0, %c0_4, %c0_5, %c0_6] : memref<1x2x32x16xf32, #tpu.memory_space<vmem>>, vector<1x2x32x16xf32>
    %9 = vector.shape_cast %8 : vector<1x2x32x16xf32> to vector<2x32x16xf32>
    %cst = arith.constant 2.500000e-01 : f32
    %10 = vector.broadcast %cst : f32 to vector<2x32x16xf32>
    %11 = arith.mulf %9, %10 : vector<2x32x16xf32>
    %c0_7 = arith.constant 0 : index
    %c0_8 = arith.constant 0 : index
    %c0_9 = arith.constant 0 : index
    %c0_10 = arith.constant 0 : index
    %12 = vector.load %arg5[%c0_7, %c0_8, %c0_9, %c0_10] : memref<1x2x128x16xf32, #tpu.memory_space<vmem>>, vector<1x2x128x16xf32>
    %13 = vector.shape_cast %12 : vector<1x2x128x16xf32> to vector<2x128x16xf32>
    %c0_11 = arith.constant 0 : index
    %c0_12 = arith.constant 0 : index
    %c0_13 = arith.constant 0 : index
    %c0_14 = arith.constant 0 : index
    %14 = vector.load %arg6[%c0_11, %c0_12, %c0_13, %c0_14] : memref<1x2x128x16xf32, #tpu.memory_space<vmem>>, vector<1x2x128x16xf32>
    %15 = vector.shape_cast %14 : vector<1x2x128x16xf32> to vector<2x128x16xf32>
    "tpu.trace_start"() <{level = 10 : i32, message = "gqd,gkd->gqk"}> : () -> ()
    %cst_15 = arith.constant dense<0.000000e+00> : vector<2x32x128xf32>
    %16 = tpu.matmul %11, %13, %cst_15 {dimension_numbers = #tpu.dot_dimension_numbers<[2], [2], [1], [1], [0, 0, 0, 1, 1, 1], [0], [0]>} : vector<2x32x16xf32>, vector<2x128x16xf32>, vector<2x32x128xf32> -> vector<2x32x128xf32>
    "tpu.trace_stop"() : () -> ()
    %c128_i32 = arith.constant 128 : i32
    %17 = arith.muli %arg3, %c128_i32 : i32
    %18 = tpu.iota {dimensions = array<i32: 1>} : vector<32x128xi32>
    %19 = vector.broadcast %17 : i32 to vector<32x128xi32>
    %20 = arith.addi %19, %18 : vector<32x128xi32>
    %c8_i32 = arith.constant 8 : i32
    %21 = vector.broadcast %c8_i32 : i32 to vector<32x128xi32>
    %22 = arith.cmpi slt, %20, %21 : vector<32x128xi32>
    %23 = vector.shape_cast %22 : vector<32x128xi1> to vector<1x32x128xi1>
    %cst_16 = arith.constant 0xFF800000 : f32
    %24 = vector.shape_cast %23 : vector<1x32x128xi1> to vector<1x32x128xi1>
    %25 = vector.broadcast %24 : vector<1x32x128xi1> to vector<2x32x128xi1>
    %26 = vector.broadcast %cst_16 : f32 to vector<2x32x128xf32>
    %27 = arith.select %25, %16, %26 : vector<2x32x128xi1>, vector<2x32x128xf32>
    %c0_17 = arith.constant 0 : index
    %c0_18 = arith.constant 0 : index
    %c0_19 = arith.constant 0 : index
    %28 = vector.load %arg10[%c0_17, %c0_18, %c0_19] : memref<2x32x1xf32, #tpu.memory_space<vmem>>, vector<2x32x1xf32>
    %cst_20 = arith.constant dense<0xFF800000> : vector<2x32xf32>
    %29 = vector.multi_reduction <maximumf>, %27, %cst_20 [2] : vector<2x32x128xf32> to vector<2x32xf32>
    %30 = vector.shape_cast %29 : vector<2x32xf32> to vector<2x32x1xf32>
    %31 = arith.maximumf %28, %30 : vector<2x32x1xf32>
    %32 = arith.subf %28, %31 : vector<2x32x1xf32>
    %33 = math.exp %32 : vector<2x32x1xf32>
    %34 = vector.broadcast %31 : vector<2x32x1xf32> to vector<2x32x128xf32>
    %35 = arith.subf %27, %34 : vector<2x32x128xf32>
    %36 = math.exp %35 : vector<2x32x128xf32>
    %c0_21 = arith.constant 0 : index
    %c0_22 = arith.constant 0 : index
    %c0_23 = arith.constant 0 : index
    %37 = vector.load %arg11[%c0_21, %c0_22, %c0_23] : memref<2x32x1xf32, #tpu.memory_space<vmem>>, vector<2x32x1xf32>
    %38 = arith.mulf %33, %37 : vector<2x32x1xf32>
    %cst_24 = arith.constant dense<0.000000e+00> : vector<2x32xf32>
    %39 = vector.multi_reduction <add>, %36, %cst_24 [2] : vector<2x32x128xf32> to vector<2x32xf32>
    %40 = vector.shape_cast %39 : vector<2x32xf32> to vector<2x32x1xf32>
    %41 = arith.addf %38, %40 : vector<2x32x1xf32>
    %c0_25 = arith.constant 0 : index
    %c0_26 = arith.constant 0 : index
    %c0_27 = arith.constant 0 : index
    %42 = vector.load %arg11[%c0_25, %c0_26, %c0_27] : memref<2x32x1xf32, #tpu.memory_space<vmem>>, vector<2x32x1xf32>
    tpu.vector_store %arg11[%c0_25, %c0_26, %c0_27], %41 {strides = array<i32>} : memref<2x32x1xf32, #tpu.memory_space<vmem>>, vector<2x32x1xf32>,
    %c0_28 = arith.constant 0 : index
    %c0_29 = arith.constant 0 : index
    %c0_30 = arith.constant 0 : index
    %43 = vector.load %arg12[%c0_28, %c0_29, %c0_30] : memref<2x32x16xf32, #tpu.memory_space<vmem>>, vector<2x32x16xf32>
    %44 = vector.broadcast %33 : vector<2x32x1xf32> to vector<2x32x16xf32>
    %45 = arith.mulf %44, %43 : vector<2x32x16xf32>
    "tpu.trace_start"() <{level = 10 : i32, message = "gqk,gkd->gqd"}> : () -> ()
    %cst_31 = arith.constant dense<0.000000e+00> : vector<2x32x16xf32>
    %46 = tpu.matmul %36, %15, %cst_31 {dimension_numbers = #tpu.dot_dimension_numbers<[2], [1], [1], [2], [0, 0, 0, 1, 1, 2], [0], [0]>} : vector<2x32x128xf32>, vector<2x128x16xf32>, vector<2x32x16xf32> -> vector<2x32x16xf32>
    "tpu.trace_stop"() : () -> ()
    %47 = arith.addf %45, %46 : vector<2x32x16xf32>
    %c0_32 = arith.constant 0 : index
    %c0_33 = arith.constant 0 : index
    %c0_34 = arith.constant 0 : index
    %48 = vector.load %arg12[%c0_32, %c0_33, %c0_34] : memref<2x32x16xf32, #tpu.memory_space<vmem>>, vector<2x32x16xf32>
    tpu.vector_store %arg12[%c0_32, %c0_33, %c0_34], %47 {strides = array<i32>} : memref<2x32x16xf32, #tpu.memory_space<vmem>>, vector<2x32x16xf32>,
    %c0_35 = arith.constant 0 : index
    %c0_36 = arith.constant 0 : index
    %c0_37 = arith.constant 0 : index
    %49 = vector.load %arg10[%c0_35, %c0_36, %c0_37] : memref<2x32x1xf32, #tpu.memory_space<vmem>>, vector<2x32x1xf32>
    tpu.vector_store %arg10[%c0_35, %c0_36, %c0_37], %31 {strides = array<i32>} : memref<2x32x1xf32, #tpu.memory_space<vmem>>, vector<2x32x1xf32>,
    %c0_i32_38 = arith.constant 0 : i32
    %50 = arith.cmpi eq, %arg3, %c0_i32_38 : i32
    %51 = arith.extui %50 : i1 to i32
    %c0_i32_39 = arith.constant 0 : i32
    %52 = arith.cmpi ne, %51, %c0_i32_39 : i32
    scf.if %52 {
      %c0_43 = arith.constant 0 : index
      %c0_44 = arith.constant 0 : index
      %c0_45 = arith.constant 0 : index
      %58 = vector.load %arg12[%c0_43, %c0_44, %c0_45] : memref<2x32x16xf32, #tpu.memory_space<vmem>>, vector<2x32x16xf32>
      %c0_46 = arith.constant 0 : index
      %c0_47 = arith.constant 0 : index
      %c0_48 = arith.constant 0 : index
      %59 = vector.load %arg11[%c0_46, %c0_47, %c0_48] : memref<2x32x1xf32, #tpu.memory_space<vmem>>, vector<2x32x1xf32>
      %cst_49 = arith.constant 1.000000e+00 : f32
      %60 = vector.broadcast %cst_49 : f32 to vector<2x32x1xf32>
      %61 = arith.divf %60, %59 : vector<2x32x1xf32>
      %62 = vector.broadcast %61 : vector<2x32x1xf32> to vector<2x32x16xf32>
      %63 = arith.mulf %58, %62 : vector<2x32x16xf32>
      %64 = vector.extract_strided_slice %63 {offsets = [0, 0, 0], sizes = [1, 32, 16], strides = [1, 1, 1]} : vector<2x32x16xf32> to vector<1x32x16xf32>
      %65 = vector.shape_cast %64 : vector<1x32x16xf32> to vector<32x16xf32>
      %66 = vector.extract_strided_slice %63 {offsets = [1, 0, 0], sizes = [1, 32, 16], strides = [1, 1, 1]} : vector<2x32x16xf32> to vector<1x32x16xf32>
      %67 = vector.shape_cast %66 : vector<1x32x16xf32> to vector<32x16xf32>
      %68 = tpu.concatenate %65, %67 in 1 : vector<32x16xf32>, vector<32x16xf32> -> vector<32x32xf32>
      %c0_50 = arith.constant 0 : index
      %c0_51 = arith.constant 0 : index
      %69 = vector.load %arg13[%c0_50, %c0_51] : memref<32x128xf32, #tpu.memory_space<vmem>>, vector<32x128xf32>
      %c0_52 = arith.constant 0 : index
      %c0_53 = arith.constant 0 : index
      %70 = vector.load %arg7[%c0_52, %c0_53] : memref<32x128xf32, #tpu.memory_space<vmem>>, vector<32x128xf32>
      %cst_54 = arith.constant dense<0.000000e+00> : vector<32x128xf32>
      %71 = tpu.matmul %68, %70, %cst_54 {dimension_numbers = #tpu.dot_dimension_numbers<[1], [0], [0], [1], [0, 0, 1, 1], [], []>} : vector<32x32xf32>, vector<32x128xf32>, vector<32x128xf32> -> vector<32x128xf32>
      %72 = arith.addf %69, %71 : vector<32x128xf32>
      %c0_55 = arith.constant 0 : index
      %c0_56 = arith.constant 0 : index
      %73 = vector.load %arg13[%c0_55, %c0_56] : memref<32x128xf32, #tpu.memory_space<vmem>>, vector<32x128xf32>
      tpu.vector_store %arg13[%c0_55, %c0_56], %72 {strides = array<i32>} : memref<32x128xf32, #tpu.memory_space<vmem>>, vector<32x128xf32>,
    } else {
    }
    %c0_i32_40 = arith.constant 0 : i32
    %53 = arith.cmpi eq, %arg2, %c0_i32_40 : i32
    %c0_i32_41 = arith.constant 0 : i32
    %54 = arith.cmpi eq, %arg3, %c0_i32_41 : i32
    %55 = arith.andi %53, %54 : i1
    %56 = arith.extui %55 : i1 to i32
    %c0_i32_42 = arith.constant 0 : i32
    %57 = arith.cmpi ne, %56, %c0_i32_42 : i32
    scf.if %57 {
      %c0_43 = arith.constant 0 : index
      %c0_44 = arith.constant 0 : index
      %58 = vector.load %arg13[%c0_43, %c0_44] : memref<32x128xf32, #tpu.memory_space<vmem>>, vector<32x128xf32>
      %c0_45 = arith.constant 0 : index
      %c0_46 = arith.constant 0 : index
      %59 = vector.load %arg8[%c0_45, %c0_46] : memref<1x128xf32, #tpu.memory_space<vmem>>, vector<1x128xf32>
      %60 = vector.broadcast %59 : vector<1x128xf32> to vector<32x128xf32>
      %61 = arith.addf %58, %60 : vector<32x128xf32>
      %c0_47 = arith.constant 0 : index
      %c0_48 = arith.constant 0 : index
      %c0_49 = arith.constant 0 : index
      %62 = vector.load %arg9[%c0_47, %c0_48, %c0_49] : memref<1x32x128xf32, #tpu.memory_space<vmem>>, vector<1x32x128xf32>
      %63 = vector.shape_cast %62 : vector<1x32x128xf32> to vector<32x128xf32>
      %64 = vector.shape_cast %61 : vector<32x128xf32> to vector<1x32x128xf32>
      tpu.vector_store %arg9[%c0_47, %c0_48, %c0_49], %64 {strides = array<i32>} : memref<1x32x128xf32, #tpu.memory_space<vmem>>, vector<1x32x128xf32>,
    } else {
    }
    return
  }
  func.func @transform_0(%arg0: i32, %arg1: i32, %arg2: i32, %arg3: i32) -> (i32, i32, i32, i32) {
    %c0_i32 = arith.constant 0 : i32
    %c0_i32_0 = arith.constant 0 : i32
    return %arg0, %arg2, %arg1, %c0_i32 : i32, i32, i32, i32
  }
  func.func @transform_1(%arg0: i32, %arg1: i32, %arg2: i32, %arg3: i32) -> (i32, i32, i32, i32) {
    %c0_i32 = arith.constant 0 : i32
    %c0_i32_0 = arith.constant 0 : i32
    return %arg0, %arg2, %arg3, %c0_i32 : i32, i32, i32, i32
  }
  func.func @transform_2(%arg0: i32, %arg1: i32, %arg2: i32, %arg3: i32) -> (i32, i32, i32, i32) {
    %c0_i32 = arith.constant 0 : i32
    %c0_i32_0 = arith.constant 0 : i32
    return %arg0, %arg2, %arg3, %c0_i32 : i32, i32, i32, i32
  }
  func.func @transform_3(%arg0: i32, %arg1: i32, %arg2: i32, %arg3: i32) -> (i32, i32) {
    %c0_i32 = arith.constant 0 : i32
    %c0_i32_0 = arith.constant 0 : i32
    return %arg2, %c0_i32 : i32, i32
  }
  func.func @transform_4(%arg0: i32, %arg1: i32, %arg2: i32, %arg3: i32) -> (i32, i32) {
    %c0_i32 = arith.constant 0 : i32
    %c0_i32_0 = arith.constant 0 : i32
    %c0_i32_1 = arith.constant 0 : i32
    return %c0_i32, %c0_i32_0 : i32, i32
  }
  func.func @transform_5(%arg0: i32, %arg1: i32, %arg2: i32, %arg3: i32) -> (i32, i32, i32) {
    %c0_i32 = arith.constant 0 : i32
    %c0_i32_0 = arith.constant 0 : i32
    return %arg0, %arg1, %c0_i32 : i32, i32, i32
  }
}

</mosaic_0001>

<llo_original>
// kernel: tpu_custom_call.1
$region0: #{tpu_custom_call.1}
  #allocation0 [shape = 'u32[]', space=smem, size = 0x4, offset = 0x4, fixed_abs, tag = 'smem constant byte address 0x4 - core index']
  #allocation1 [shape = 'u32[144,128]{1,0:T(1,128)}', space=vmem, size = 0x12000, scoped, tag = 'internal scratch']
  #allocation2 [shape = 'f32[2,32,1]{2,1,0:T(8,128)}', space=vmem, size = 0x8000, scoped, tag = 'scratch operand']
  #allocation3 [shape = 'f32[2,32,1]{2,1,0:T(8,128)}', space=vmem, size = 0x8000, scoped, tag = 'scratch operand']
  #allocation4 [shape = 'f32[2,32,16]{2,1,0:T(8,128)}', space=vmem, size = 0x8000, scoped, tag = 'scratch operand']
  #allocation5 [shape = 'f32[32,128]{1,0:T(8,128)}', space=vmem, size = 0x4000, scoped, tag = 'scratch operand']
  %s0 = inlined_call_operand.vmem [shape: f32[2,2,32,16], index: 0, kind: input, shape index: {}]
  %s1 = inlined_call_operand.vmem [shape: f32[2,2,128,16], index: 1, kind: input, shape index: {}]
  %s2 = inlined_call_operand.vmem [shape: f32[2,2,128,16], index: 2, kind: input, shape index: {}]
  %s3 = inlined_call_operand.vmem [shape: f32[32,128], index: 3, kind: input, shape index: {}]
  %s4 = inlined_call_operand.vmem [shape: f32[1,128], index: 4, kind: input, shape index: {}]
  %s5 = inlined_call_operand.hbm [shape: f32[2,32,128], index: 5, kind: output, shape index: {}]
  %s6 = sld [smem:[#allocation0]]
  $region69: #{tpu_custom_call.1} parent=0
    _
  %s8 = ssub.s32 1, %s6
  %s9 = scalar_select 0, %s8, %s6
  $region1: #{tpu_custom_call.1} parent=0
    #allocation6 [shape = 'u8[32768]{0}', space=vmem, size = 0x8000, scoped, tag = 'output window, operand 0']
    #allocation7 [shape = 's32[2]{0}', space=sflag, size = 0x8, scoped, tag = 'scoped memory for tpu_custom_call.1']
    %10 = vsyncpa [#allocation7], 0
    %s11 = scalar_lea.sflag [#allocation7], 1
    %12 = vsyncpa %s11, 0
    loop: start=0, step=1, limit=4
    $region2: #{tpu_custom_call.1} parent=1 // loop_pre_header
      _
    $region3: #{tpu_custom_call.1} parent=1 // loop_header
      %s14 = sphi 0, %s18
      %p15 = scmp.ge.s32.totalorder %s14, 4
      %s21 = sphi 0, %s47
      %s22 = sphi 0, %s43
      %s23 = sphi 0, %s39
      %s24 = sphi 0, %s35
      %s25 = sphi 0, %s21
      %s26 = sphi 0, %s22
      %s27 = sphi 0, %s23
      %s28 = sphi 0, %s24
      %s29 = sphi 0, %s25
      %s30 = sphi 0, %s26
      %s31 = sphi 0, %s27
      %s32 = sphi 0, %s28
      %s54 = sphi 0, %s56
      %s57 = sphi 0, %s54
      %s58 = sphi 0, %s57
      %s74 = sphi 0, %s58
      %s84 = sphi 0, %s86
      %s87 = sphi 0, %s84
      %s88 = sphi 0, %s87
      %s104 = sphi 0, %s88
      %s114 = sphi 0, %s116
      %s117 = sphi 0, %s114
      %s118 = sphi 0, %s117
      %s134 = sphi 0, %s118
      %s140 = sphi 0, %s142
      %s143 = sphi 0, %s140
      %s144 = sphi 0, %s143
      %s160 = sphi 0, %s144
      %s164 = sphi 0, %s164
      %s166 = sphi 0, %s164
      %s167 = sphi 0, %s166
      %s181 = sphi 0, %s167
      %s189 = sphi 0, %s191
      %s192 = sphi 0, %s189
      %s193 = sphi 0, %s192
      %s209 = sphi 0, %s193
    $region4: #{tpu_custom_call.1} parent=1 // loop_header_branch
      %17 = sbr.rel (%p15) target = $region8
    $region5: #{tpu_custom_call.1} parent=1 // loop_body
      %s19 = ssub.s32 %s14, 1
      %s20 = ssub.s32 %s14, 2
      %s33 = sadd.s32 1, %s24
      %p34 = scmp.ge.s32.totalorder %s33, 1
      %s35 = scalar_select %p34, 0, %s33
      %s36 = sadd.s32 1, %s23
      %s37 = scalar_select %p34, %s36, %s23
      %p38 = scmp.ge.s32.totalorder %s37, 1
      %s39 = scalar_select %p38, 0, %s37
      %s40 = sadd.s32 1, %s22
      %s41 = scalar_select %p38, %s40, %s22
      %p42 = scmp.ge.s32.totalorder %s41, 1
      %s43 = scalar_select %p42, 0, %s41
      %s44 = sadd.s32 1, %s21
      %s45 = scalar_select %p42, %s44, %s21
      %p46 = scmp.ge.s32.totalorder %s45, 2
      %s47 = scalar_select %p46, 0, %s45
      %s48 = ssub.s32 %s21, %s47
      %s49 = ssub.s32 %s23, %s39
      %s50 = sor.u32 %s48, %s49
      %s51 = ssub.s32 %s22, %s43
      %s52 = sor.u32 %s50, %s51
      %p53 = scmp.eq.s32.totalorder %s52, 0
      %s55 = sadd.s32 %s54, 1
      %s56 = scalar_select %p53, %s54, %s55
      %p59 = pneg %p53
      %p60 = scmp.eq.s32.totalorder %s14, 1
      %p61 = por %p59, %p60
      %p62 = scmp.ne.s32.totalorder %s54, %s57
      %p63 = scmp.eq.s32.totalorder %s14, 0
      %p64 = por %p62, %p63
      %p65 = scmp.ne.s32.totalorder %s54, %s57
      %p66 = scmp.eq.s32.totalorder %s19, 1
      %p67 = por %p65, %p66
      %p68 = scmp.ne.s32.totalorder %s57, %s58
      %p69 = scmp.eq.s32.totalorder %s19, 0
      %p70 = por %p68, %p69
      %p71 = scmp.ne.s32.totalorder %s57, %s58
      %p72 = scmp.eq.s32.totalorder %s20, 1
      %p73 = por %p71, %p72
      %p75 = scmp.ne.s32.totalorder %s58, %s74
      %p76 = scmp.eq.s32.totalorder %s20, 0
      %p77 = por %p75, %p76
      %s78 = ssub.s32 %s21, %s47
      %s79 = ssub.s32 %s23, %s39
      %s80 = sor.u32 %s78, %s79
      %s81 = ssub.s32 %s24, %s35
      %s82 = sor.u32 %s80, %s81
      %p83 = scmp.eq.s32.totalorder %s82, 0
      %s85 = sadd.s32 %s84, 1
      %s86 = scalar_select %p83, %s84, %s85
      %p89 = pneg %p83
      %p90 = scmp.eq.s32.totalorder %s14, 1
      %p91 = por %p89, %p90
      %p92 = scmp.ne.s32.totalorder %s84, %s87
      %p93 = scmp.eq.s32.totalorder %s14, 0
      %p94 = por %p92, %p93
      %p95 = scmp.ne.s32.totalorder %s84, %s87
      %p96 = scmp.eq.s32.totalorder %s19, 1
      %p97 = por %p95, %p96
      %p98 = scmp.ne.s32.totalorder %s87, %s88
      %p99 = scmp.eq.s32.totalorder %s19, 0
      %p100 = por %p98, %p99
      %p101 = scmp.ne.s32.totalorder %s87, %s88
      %p102 = scmp.eq.s32.totalorder %s20, 1
      %p103 = por %p101, %p102
      %p105 = scmp.ne.s32.totalorder %s88, %s104
      %p106 = scmp.eq.s32.totalorder %s20, 0
      %p107 = por %p105, %p106
      %s108 = ssub.s32 %s21, %s47
      %s109 = ssub.s32 %s23, %s39
      %s110 = sor.u32 %s108, %s109
      %s111 = ssub.s32 %s24, %s35
      %s112 = sor.u32 %s110, %s111
      %p113 = scmp.eq.s32.totalorder %s112, 0
      %s115 = sadd.s32 %s114, 1
      %s116 = scalar_select %p113, %s114, %s115
      %p119 = pneg %p113
      %p120 = scmp.eq.s32.totalorder %s14, 1
      %p121 = por %p119, %p120
      %p122 = scmp.ne.s32.totalorder %s114, %s117
      %p123 = scmp.eq.s32.totalorder %s14, 0
      %p124 = por %p122, %p123
      %p125 = scmp.ne.s32.totalorder %s114, %s117
      %p126 = scmp.eq.s32.totalorder %s19, 1
      %p127 = por %p125, %p126
      %p128 = scmp.ne.s32.totalorder %s117, %s118
      %p129 = scmp.eq.s32.totalorder %s19, 0
      %p130 = por %p128, %p129
      %p131 = scmp.ne.s32.totalorder %s117, %s118
      %p132 = scmp.eq.s32.totalorder %s20, 1
      %p133 = por %p131, %p132
      %p135 = scmp.ne.s32.totalorder %s118, %s134
      %p136 = scmp.eq.s32.totalorder %s20, 0
      %p137 = por %p135, %p136
      %s138 = ssub.s32 %s23, %s39
      %p139 = scmp.eq.s32.totalorder %s138, 0
      %s141 = sadd.s32 %s140, 1
      %s142 = scalar_select %p139, %s140, %s141
      %p145 = pneg %p139
      %p146 = scmp.eq.s32.totalorder %s14, 1
      %p147 = por %p145, %p146
      %p148 = scmp.ne.s32.totalorder %s140, %s143
      %p149 = scmp.eq.s32.totalorder %s14, 0
      %p150 = por %p148, %p149
      %p151 = scmp.ne.s32.totalorder %s140, %s143
      %p152 = scmp.eq.s32.totalorder %s19, 1
      %p153 = por %p151, %p152
      %p154 = scmp.ne.s32.totalorder %s143, %s144
      %p155 = scmp.eq.s32.totalorder %s19, 0
      %p156 = por %p154, %p155
      %p157 = scmp.ne.s32.totalorder %s143, %s144
      %p158 = scmp.eq.s32.totalorder %s20, 1
      %p159 = por %p157, %p158
      %p161 = scmp.ne.s32.totalorder %s144, %s160
      %p162 = scmp.eq.s32.totalorder %s20, 0
      %p163 = por %p161, %p162
      %s165 = sadd.s32 %s164, 1
      %p168 = scmp.eq.s32.totalorder %s14, 1
      %p169 = scmp.ne.s32.totalorder %s164, %s166
      %p170 = scmp.eq.s32.totalorder %s14, 0
      %p171 = por %p169, %p170
      %p172 = scmp.ne.s32.totalorder %s164, %s166
      %p173 = scmp.eq.s32.totalorder %s19, 1
      %p174 = por %p172, %p173
      %p175 = scmp.ne.s32.totalorder %s166, %s167
      %p176 = scmp.eq.s32.totalorder %s19, 0
      %p177 = por %p175, %p176
      %p178 = scmp.ne.s32.totalorder %s166, %s167
      %p179 = scmp.eq.s32.totalorder %s20, 1
      %p180 = por %p178, %p179
      %p182 = scmp.ne.s32.totalorder %s167, %s181
      %p183 = scmp.eq.s32.totalorder %s20, 0
      %p184 = por %p182, %p183
      %s185 = ssub.s32 %s21, %s47
      %s186 = ssub.s32 %s22, %s43
      %s187 = sor.u32 %s185, %s186
      %p188 = scmp.eq.s32.totalorder %s187, 0
      %s190 = sadd.s32 %s189, 1
      %s191 = scalar_select %p188, %s189, %s190
      %p194 = pneg %p188
      %p195 = scmp.eq.s32.totalorder %s14, 1
      %p196 = por %p194, %p195
      %p197 = scmp.ne.s32.totalorder %s189, %s192
      %p198 = scmp.eq.s32.totalorder %s14, 0
      %p199 = por %p197, %p198
      %p200 = scmp.ne.s32.totalorder %s189, %s192
      %p201 = scmp.eq.s32.totalorder %s19, 1
      %p202 = por %p200, %p201
      %p203 = scmp.ne.s32.totalorder %s192, %s193
      %p204 = scmp.eq.s32.totalorder %s19, 0
      %p205 = por %p203, %p204
      %p206 = scmp.ne.s32.totalorder %s192, %s193
      %p207 = scmp.eq.s32.totalorder %s20, 1
      %p208 = por %p206, %p207
      %p210 = scmp.ne.s32.totalorder %s193, %s209
      %p211 = scmp.eq.s32.totalorder %s20, 0
      %p212 = por %p210, %p211
      %p213 = scmp.le.s32.totalorder 1, %s14
      %p214 = scmp.lt.s32.totalorder %s14, 3
      %p215 = pnand %p213, %p214
      %p216 = pneg %p215
      // Predicated region
      $region9: #{tpu_custom_call.1} parent=5 // pred_check
        _
      $region10: #{tpu_custom_call.1} parent=5 // pred_check_branch
        %218 = sbr.rel (%p215) target = $region12
      $region11: #{tpu_custom_call.1} parent=5 // pred_region
        %s219 = ssub.s32 %s14, 1
        // Predicated region
        $region13: #{tpu_custom_call.1} parent=11 // pred_check
          %p220 = pneg %p156
        $region14: #{tpu_custom_call.1} parent=11 // pred_check_branch
          %222 = sbr.rel (%p220) target = $region16
        $region15: #{tpu_custom_call.1} parent=11 // pred_region
          %s223 = smul.u32 4, %s27
          %p224 = scmp.lt.s32.totalorder %s223, 3
          %s225 = scalar_select %p224, %s223, 3
          %s226 = smul.addr %s225, 8
          %s227 = scalar_lea.vmem %s3, %s226
          %s228 = smul.u32 4, %s27
        $region16: #{tpu_custom_call.1} parent=11 // pred_fallthru
          _
        // Predicated region
        $region17: #{tpu_custom_call.1} parent=11 // pred_check
          %p229 = pneg %p177
        $region18: #{tpu_custom_call.1} parent=11 // pred_check_branch
          %231 = sbr.rel (%p229) target = $region20
        $region19: #{tpu_custom_call.1} parent=11 // pred_region
          _
        $region20: #{tpu_custom_call.1} parent=11 // pred_fallthru
          _
      $region12: #{tpu_custom_call.1} parent=5 // pred_fallthru
        _
      %p232 = scmp.lt.s32.totalorder %s14, 2
      // Predicated region
      $region21: #{tpu_custom_call.1} parent=5 // pred_check
        %p233 = pneg %p232
      $region22: #{tpu_custom_call.1} parent=5 // pred_check_branch
        %235 = sbr.rel (%p233) target = $region24
      $region23: #{tpu_custom_call.1} parent=5 // pred_region
        // Predicated region
        $region25: #{tpu_custom_call.1} parent=23 // pred_check
          %p236 = pneg %p64
        $region26: #{tpu_custom_call.1} parent=23 // pred_check_branch
          %238 = sbr.rel (%p236) target = $region28
        $region27: #{tpu_custom_call.1} parent=23 // pred_region
          %s239 = smul.u32 2, %s23
          %s240 = smul.u32 4, %s22
          %p241 = scmp.lt.s32.totalorder %s21, 1
          %s242 = scalar_select %p241, %s21, 1
          %p243 = scmp.lt.s32.totalorder %s239, 1
          %s244 = scalar_select %p243, %s239, 1
          %p245 = scmp.lt.s32.totalorder %s240, 3
          %s246 = scalar_select %p245, %s240, 3
          %s247 = smul.addr %s244, 4
          %s248 = sadd.s32 %s246, %s247
          %s249 = smul.addr %s242, 8
          %s250 = sadd.s32 %s248, %s249
          %s251 = smul.addr %s250, 8
          %s252 = scalar_lea.vmem %s0, %s251
          %s253 = smul.u32 2, %s23
          %s254 = smul.u32 4, %s22
        $region28: #{tpu_custom_call.1} parent=23 // pred_fallthru
          _
        // Predicated region
        $region29: #{tpu_custom_call.1} parent=23 // pred_check
          %p255 = pneg %p94
        $region30: #{tpu_custom_call.1} parent=23 // pred_check_branch
          %257 = sbr.rel (%p255) target = $region32
        $region31: #{tpu_custom_call.1} parent=23 // pred_region
          %s258 = smul.u32 2, %s23
          %s259 = smul.u32 16, %s24
          %p260 = scmp.lt.s32.totalorder %s21, 1
          %s261 = scalar_select %p260, %s21, 1
          %p262 = scmp.lt.s32.totalorder %s258, 1
          %s263 = scalar_select %p262, %s258, 1
          %p264 = scmp.lt.s32.totalorder %s259, 15
          %s265 = scalar_select %p264, %s259, 15
          %s266 = smul.addr %s263, 16
          %s267 = sadd.s32 %s265, %s266
          %s268 = smul.addr %s261, 32
          %s269 = sadd.s32 %s267, %s268
          %s270 = smul.addr %s269, 8
          %s271 = scalar_lea.vmem %s1, %s270
          %s272 = smul.u32 2, %s23
          %s273 = smul.u32 16, %s24
        $region32: #{tpu_custom_call.1} parent=23 // pred_fallthru
          _
        // Predicated region
        $region33: #{tpu_custom_call.1} parent=23 // pred_check
          %p274 = pneg %p124
        $region34: #{tpu_custom_call.1} parent=23 // pred_check_branch
          %276 = sbr.rel (%p274) target = $region36
        $region35: #{tpu_custom_call.1} parent=23 // pred_region
          %s277 = smul.u32 2, %s23
          %s278 = smul.u32 16, %s24
          %p279 = scmp.lt.s32.totalorder %s21, 1
          %s280 = scalar_select %p279, %s21, 1
          %p281 = scmp.lt.s32.totalorder %s277, 1
          %s282 = scalar_select %p281, %s277, 1
          %p283 = scmp.lt.s32.totalorder %s278, 15
          %s284 = scalar_select %p283, %s278, 15
          %s285 = smul.addr %s282, 16
          %s286 = sadd.s32 %s284, %s285
          %s287 = smul.addr %s280, 32
          %s288 = sadd.s32 %s286, %s287
          %s289 = smul.addr %s288, 8
          %s290 = scalar_lea.vmem %s2, %s289
          %s291 = smul.u32 2, %s23
          %s292 = smul.u32 16, %s24
        $region36: #{tpu_custom_call.1} parent=23 // pred_fallthru
          _
      $region24: #{tpu_custom_call.1} parent=5 // pred_fallthru
        _
      %p293 = scmp.le.s32.totalorder 1, %s14
      %p294 = scmp.lt.s32.totalorder %s14, 3
      %p295 = pnand %p293, %p294
      %p296 = pneg %p295
      // Predicated region
      $region37: #{tpu_custom_call.1} parent=5 // pred_check
        _
      $region38: #{tpu_custom_call.1} parent=5 // pred_check_branch
        %298 = sbr.rel (%p295) target = $region40
      $region39: #{tpu_custom_call.1} parent=5 // pred_region
        %s299 = ssub.s32 %s14, 1
        %s300 = smul.u32 2, %s27
        %s301 = smul.u32 4, %s26
        %p302 = scmp.lt.s32.totalorder %s25, 1
        %s303 = scalar_select %p302, %s25, 1
        %p304 = scmp.lt.s32.totalorder %s300, 1
        %s305 = scalar_select %p304, %s300, 1
        %p306 = scmp.lt.s32.totalorder %s301, 3
        %s307 = scalar_select %p306, %s301, 3
        %s308 = smul.addr %s305, 4
        %s309 = sadd.s32 %s307, %s308
        %s310 = smul.addr %s303, 8
        %s311 = sadd.s32 %s309, %s310
        %s312 = smul.addr %s311, 8
        %s313 = scalar_lea.vmem %s0, %s312
        %p314 = pneg %p70
        %p315 = pneg %p67
        %s316 = smul.u32 2, %s27
        %s317 = smul.u32 16, %s28
        %p318 = scmp.lt.s32.totalorder %s25, 1
        %s319 = scalar_select %p318, %s25, 1
        %p320 = scmp.lt.s32.totalorder %s316, 1
        %s321 = scalar_select %p320, %s316, 1
        %p322 = scmp.lt.s32.totalorder %s317, 15
        %s323 = scalar_select %p322, %s317, 15
        %s324 = smul.addr %s321, 16
        %s325 = sadd.s32 %s323, %s324
        %s326 = smul.addr %s319, 32
        %s327 = sadd.s32 %s325, %s326
        %s328 = smul.addr %s327, 8
        %s329 = scalar_lea.vmem %s1, %s328
        %p330 = pneg %p100
        %p331 = pneg %p97
        %s332 = smul.u32 2, %s27
        %s333 = smul.u32 16, %s28
        %p334 = scmp.lt.s32.totalorder %s25, 1
        %s335 = scalar_select %p334, %s25, 1
        %p336 = scmp.lt.s32.totalorder %s332, 1
        %s337 = scalar_select %p336, %s332, 1
        %p338 = scmp.lt.s32.totalorder %s333, 15
        %s339 = scalar_select %p338, %s333, 15
        %s340 = smul.addr %s337, 16
        %s341 = sadd.s32 %s339, %s340
        %s342 = smul.addr %s335, 32
        %s343 = sadd.s32 %s341, %s342
        %s344 = smul.addr %s343, 8
        %s345 = scalar_lea.vmem %s2, %s344
        %p346 = pneg %p130
        %p347 = pneg %p127
        %s348 = smul.u32 4, %s27
        %p349 = scmp.lt.s32.totalorder %s348, 3
        %s350 = scalar_select %p349, %s348, 3
        %s351 = smul.addr %s350, 8
        %s352 = scalar_lea.vmem %s3, %s351
        %p353 = pneg %p156
        %p354 = pneg %p153
        %p355 = pneg %p177
        %p356 = pneg %p174
        %p357 = pneg %p205
        %p358 = pneg %p202
        %s359 = sand.u32 %s192, 1
        %s360 = scalar_lea.sflag [#allocation7], %s359
        %s361 = sand.u32 %s192, 1
        %s362 = smul.addr %s361, 32
        %s363 = scalar_lea.vmem [#allocation6], %s362
        %s364 = smul.u32 2, %s27
        %s365 = smul.u32 4, %s26
        %p366 = scmp.lt.s32.totalorder %s25, 1
        %s367 = scalar_select %p366, %s25, 1
        %p368 = scmp.lt.s32.totalorder %s364, 1
        %s369 = scalar_select %p368, %s364, 1
        %p370 = scmp.lt.s32.totalorder %s365, 3
        %s371 = scalar_select %p370, %s365, 3
        %s372 = smul.addr %s369, 4
        %s373 = sadd.s32 %s371, %s372
        %s374 = smul.addr %s367, 8
        %s375 = sadd.s32 %s373, %s374
        %s376 = smul.addr %s375, 8
        %s377 = scalar_lea.vmem %s0, %s376
        %s378 = smul.u32 2, %s27
        %s379 = smul.u32 4, %s26
        %s380 = smul.u32 2, %s27
        %s381 = smul.u32 16, %s28
        %p382 = scmp.lt.s32.totalorder %s25, 1
        %s383 = scalar_select %p382, %s25, 1
        %p384 = scmp.lt.s32.totalorder %s380, 1
        %s385 = scalar_select %p384, %s380, 1
        %p386 = scmp.lt.s32.totalorder %s381, 15
        %s387 = scalar_select %p386, %s381, 15
        %s388 = smul.addr %s385, 16
        %s389 = sadd.s32 %s387, %s388
        %s390 = smul.addr %s383, 32
        %s391 = sadd.s32 %s389, %s390
        %s392 = smul.addr %s391, 8
        %s393 = scalar_lea.vmem %s1, %s392
        %s394 = smul.u32 2, %s27
        %s395 = smul.u32 16, %s28
        %s396 = smul.u32 2, %s27
        %s397 = smul.u32 16, %s28
        %p398 = scmp.lt.s32.totalorder %s25, 1
        %s399 = scalar_select %p398, %s25, 1
        %p400 = scmp.lt.s32.totalorder %s396, 1
        %s401 = scalar_select %p400, %s396, 1
        %p402 = scmp.lt.s32.totalorder %s397, 15
        %s403 = scalar_select %p402, %s397, 15
        %s404 = smul.addr %s401, 16
        %s405 = sadd.s32 %s403, %s404
        %s406 = smul.addr %s399, 32
        %s407 = sadd.s32 %s405, %s406
        %s408 = smul.addr %s407, 8
        %s409 = scalar_lea.vmem %s2, %s408
        %s410 = smul.u32 2, %s27
        %s411 = smul.u32 16, %s28
        %s412 = smul.u32 4, %s27
        %p413 = scmp.lt.s32.totalorder %s412, 3
        %s414 = scalar_select %p413, %s412, 3
        %s415 = smul.addr %s414, 8
        %s416 = scalar_lea.vmem %s3, %s415
        %s417 = smul.u32 4, %s27
        %s418 = smul.u32 4, %s26
        %p419 = scmp.eq.s32.totalorder %s27, 0
        %p420 = scmp.eq.s32.totalorder %s28, 0
        %p421 = pnand %p419, %p420
        %p422 = pneg %p421
        // Predicated region
        $region41: #{tpu_custom_call.1} parent=39 // pred_check
          _
        $region42: #{tpu_custom_call.1} parent=39 // pred_check_branch
          %424 = sbr.rel (%p421) target = $region44
        $region43: #{tpu_custom_call.1} parent=39 // pred_region
          %425 = vst [vmem:[#allocation5] sm:$0xff] 0.0
          %426 = vst [vmem:[#allocation5 + $0x8] sm:$0xff] 0.0
          %427 = vst [vmem:[#allocation5 + $0x10] sm:$0xff] 0.0
          %428 = vst [vmem:[#allocation5 + $0x18] sm:$0xff] 0.0
        $region44: #{tpu_custom_call.1} parent=39 // pred_fallthru
          _
        // Predicated region
        $region45: #{tpu_custom_call.1} parent=39 // pred_check
          %p429 = pneg %p420
        $region46: #{tpu_custom_call.1} parent=39 // pred_check_branch
          %431 = sbr.rel (%p429) target = $region48
        $region47: #{tpu_custom_call.1} parent=39 // pred_region
          %vm432 = vcmask 7168
          %433 = vst.msk [vmem:[#allocation2] sm:$0xff] %vm432, -inf
          %434 = vst.msk [vmem:[#allocation2 + $0x8] sm:$0xff] %vm432, -inf
          %435 = vst.msk [vmem:[#allocation2 + $0x10] sm:$0xff] %vm432, -inf
          %436 = vst.msk [vmem:[#allocation2 + $0x18] sm:$0xff] %vm432, -inf
          %437 = vst.msk [vmem:[#allocation2 + $0x20] sm:$0xff] %vm432, -inf
          %438 = vst.msk [vmem:[#allocation2 + $0x28] sm:$0xff] %vm432, -inf
          %439 = vst.msk [vmem:[#allocation2 + $0x30] sm:$0xff] %vm432, -inf
          %440 = vst.msk [vmem:[#allocation2 + $0x38] sm:$0xff] %vm432, -inf
          %441 = vst.msk [vmem:[#allocation3] sm:$0xff] %vm432, 0.0
          %442 = vst.msk [vmem:[#allocation3 + $0x8] sm:$0xff] %vm432, 0.0
          %443 = vst.msk [vmem:[#allocation3 + $0x10] sm:$0xff] %vm432, 0.0
          %444 = vst.msk [vmem:[#allocation3 + $0x18] sm:$0xff] %vm432, 0.0
          %445 = vst.msk [vmem:[#allocation3 + $0x20] sm:$0xff] %vm432, 0.0
          %446 = vst.msk [vmem:[#allocation3 + $0x28] sm:$0xff] %vm432, 0.0
          %447 = vst.msk [vmem:[#allocation3 + $0x30] sm:$0xff] %vm432, 0.0
          %448 = vst.msk [vmem:[#allocation3 + $0x38] sm:$0xff] %vm432, 0.0
          %vm449 = vcmask 130048
          %450 = vst.msk [vmem:[#allocation4] sm:$0xff] %vm449, 0.0
          %451 = vst.msk [vmem:[#allocation4 + $0x8] sm:$0xff] %vm449, 0.0
          %452 = vst.msk [vmem:[#allocation4 + $0x10] sm:$0xff] %vm449, 0.0
          %453 = vst.msk [vmem:[#allocation4 + $0x18] sm:$0xff] %vm449, 0.0
          %454 = vst.msk [vmem:[#allocation4 + $0x20] sm:$0xff] %vm449, 0.0
          %455 = vst.msk [vmem:[#allocation4 + $0x28] sm:$0xff] %vm449, 0.0
          %456 = vst.msk [vmem:[#allocation4 + $0x30] sm:$0xff] %vm449, 0.0
          %457 = vst.msk [vmem:[#allocation4 + $0x38] sm:$0xff] %vm449, 0.0
        $region48: #{tpu_custom_call.1} parent=39 // pred_fallthru
          _
        %v458 = vld [vmem:[%s377] sm:$0xff]
        %v459 = vld [vmem:[%s377 + $0x8] sm:$0xff]
        %v460 = vld [vmem:[%s377 + $0x10] sm:$0xff]
        %v461 = vld [vmem:[%s377 + $0x18] sm:$0xff]
        %v462 = vld [vmem:[%s377 + $0x20] sm:$0xff]
        %v463 = vld [vmem:[%s377 + $0x28] sm:$0xff]
        %v464 = vld [vmem:[%s377 + $0x30] sm:$0xff]
        %v465 = vld [vmem:[%s377 + $0x38] sm:$0xff]
        %v466 = vmul.f32 %v458, 0.25
        %v467 = vmul.f32 %v459, 0.25
        %v468 = vmul.f32 %v460, 0.25
        %v469 = vmul.f32 %v461, 0.25
        %v470 = vmul.f32 %v462, 0.25
        %v471 = vmul.f32 %v463, 0.25
        %v472 = vmul.f32 %v464, 0.25
        %v473 = vmul.f32 %v465, 0.25
        %v474 = vld [vmem:[%s393] sm:$0xff]
        %v475 = vld [vmem:[%s393 + $0x8] sm:$0xff]
        %v476 = vld [vmem:[%s393 + $0x10] sm:$0xff]
        %v477 = vld [vmem:[%s393 + $0x18] sm:$0xff]
        %v478 = vld [vmem:[%s393 + $0x20] sm:$0xff]
        %v479 = vld [vmem:[%s393 + $0x28] sm:$0xff]
        %v480 = vld [vmem:[%s393 + $0x30] sm:$0xff]
        %v481 = vld [vmem:[%s393 + $0x38] sm:$0xff]
        %v482 = vld [vmem:[%s393 + $0x40] sm:$0xff]
        %v483 = vld [vmem:[%s393 + $0x48] sm:$0xff]
        %v484 = vld [vmem:[%s393 + $0x50] sm:$0xff]
        %v485 = vld [vmem:[%s393 + $0x58] sm:$0xff]
        %v486 = vld [vmem:[%s393 + $0x60] sm:$0xff]
        %v487 = vld [vmem:[%s393 + $0x68] sm:$0xff]
        %v488 = vld [vmem:[%s393 + $0x70] sm:$0xff]
        %v489 = vld [vmem:[%s393 + $0x78] sm:$0xff]
        %v490 = vld [vmem:[%s393 + $0x80] sm:$0xff]
        %v491 = vld [vmem:[%s393 + $0x88] sm:$0xff]
        %v492 = vld [vmem:[%s393 + $0x90] sm:$0xff]
        %v493 = vld [vmem:[%s393 + $0x98] sm:$0xff]
        %v494 = vld [vmem:[%s393 + $0xa0] sm:$0xff]
        %v495 = vld [vmem:[%s393 + $0xa8] sm:$0xff]
        %v496 = vld [vmem:[%s393 + $0xb0] sm:$0xff]
        %v497 = vld [vmem:[%s393 + $0xb8] sm:$0xff]
        %v498 = vld [vmem:[%s393 + $0xc0] sm:$0xff]
        %v499 = vld [vmem:[%s393 + $0xc8] sm:$0xff]
        %v500 = vld [vmem:[%s393 + $0xd0] sm:$0xff]
        %v501 = vld [vmem:[%s393 + $0xd8] sm:$0xff]
        %v502 = vld [vmem:[%s393 + $0xe0] sm:$0xff]
        %v503 = vld [vmem:[%s393 + $0xe8] sm:$0xff]
        %v504 = vld [vmem:[%s393 + $0xf0] sm:$0xff]
        %v505 = vld [vmem:[%s393 + $0xf8] sm:$0xff]
        %v506 = vld [vmem:[%s409] sm:$0xff]
        %v507 = vld [vmem:[%s409 + $0x8] sm:$0xff]
        %v508 = vld [vmem:[%s409 + $0x10] sm:$0xff]
        %v509 = vld [vmem:[%s409 + $0x18] sm:$0xff]
        %v510 = vld [vmem:[%s409 + $0x20] sm:$0xff]
        %v511 = vld [vmem:[%s409 + $0x28] sm:$0xff]
        %v512 = vld [vmem:[%s409 + $0x30] sm:$0xff]
        %v513 = vld [vmem:[%s409 + $0x38] sm:$0xff]
        %v514 = vld [vmem:[%s409 + $0x40] sm:$0xff]
        %v515 = vld [vmem:[%s409 + $0x48] sm:$0xff]
        %v516 = vld [vmem:[%s409 + $0x50] sm:$0xff]
        %v517 = vld [vmem:[%s409 + $0x58] sm:$0xff]
        %v518 = vld [vmem:[%s409 + $0x60] sm:$0xff]
        %v519 = vld [vmem:[%s409 + $0x68] sm:$0xff]
        %v520 = vld [vmem:[%s409 + $0x70] sm:$0xff]
        %v521 = vld [vmem:[%s409 + $0x78] sm:$0xff]
        %v522 = vld [vmem:[%s409 + $0x80] sm:$0xff]
        %v523 = vld [vmem:[%s409 + $0x88] sm:$0xff]
        %v524 = vld [vmem:[%s409 + $0x90] sm:$0xff]
        %v525 = vld [vmem:[%s409 + $0x98] sm:$0xff]
        %v526 = vld [vmem:[%s409 + $0xa0] sm:$0xff]
        %v527 = vld [vmem:[%s409 + $0xa8] sm:$0xff]
        %v528 = vld [vmem:[%s409 + $0xb0] sm:$0xff]
        %v529 = vld [vmem:[%s409 + $0xb8] sm:$0xff]
        %v530 = vld [vmem:[%s409 + $0xc0] sm:$0xff]
        %v531 = vld [vmem:[%s409 + $0xc8] sm:$0xff]
        %v532 = vld [vmem:[%s409 + $0xd0] sm:$0xff]
        %v533 = vld [vmem:[%s409 + $0xd8] sm:$0xff]
        %v534 = vld [vmem:[%s409 + $0xe0] sm:$0xff]
        %v535 = vld [vmem:[%s409 + $0xe8] sm:$0xff]
        %v536 = vld [vmem:[%s409 + $0xf0] sm:$0xff]
        %v537 = vld [vmem:[%s409 + $0xf8] sm:$0xff]
        %vm538 = vcmask 130048
        %v540 = vsel %vm538, %v466, 0
        %v543 = vsel %vm538, %v467, 0
        %v546 = vsel %vm538, %v468, 0
        %v549 = vsel %vm538, %v469, 0
        %v552 = vsel %vm538, %v474, 0
        %v555 = vsel %vm538, %v475, 0
        %v558 = vsel %vm538, %v476, 0
        %v561 = vsel %vm538, %v477, 0
        %v564 = vsel %vm538, %v478, 0
        %v567 = vsel %vm538, %v479, 0
        %v570 = vsel %vm538, %v480, 0
        %v573 = vsel %vm538, %v481, 0
        %v576 = vsel %vm538, %v482, 0
        %v579 = vsel %vm538, %v483, 0
        %v582 = vsel %vm538, %v484, 0
        %v585 = vsel %vm538, %v485, 0
        %v588 = vsel %vm538, %v486, 0
        %v591 = vsel %vm538, %v487, 0
        %v594 = vsel %vm538, %v488, 0
        %v597 = vsel %vm538, %v489, 0
        %599 = vmatprep.subr.mxu0 0.0
        %600 = vmatpush1.xpose.msra.mxu0 %v552
        %601 = vmatprep.subr.mxu0 0.0
        %602 = vmatpush1.xpose.msra.mxu0 %v555
        %603 = vmatprep.subr.mxu0 0.0
        %604 = vmatpush1.xpose.msra.mxu0 %v558
        %605 = vmatprep.subr.mxu0 0.0
        %606 = vmatpush1.xpose.msra.mxu0 %v561
        %607 = vmatprep.subr.mxu0 0.0
        %608 = vmatpush1.xpose.msra.mxu0 %v564
        %609 = vmatprep.subr.mxu0 0.0
        %610 = vmatpush1.xpose.msra.mxu0 %v567
        %611 = vmatprep.subr.mxu0 0.0
        %612 = vmatpush1.xpose.msra.mxu0 %v570
        %613 = vmatprep.subr.mxu0 0.0
        %614 = vmatpush1.xpose.msra.mxu0 %v573
        %615 = vmatprep.subr.mxu0 0.0
        %616 = vmatpush1.xpose.msra.mxu0 %v576
        %617 = vmatprep.subr.mxu0 0.0
        %618 = vmatpush1.xpose.msra.mxu0 %v579
        %619 = vmatprep.subr.mxu0 0.0
        %620 = vmatpush1.xpose.msra.mxu0 %v582
        %621 = vmatprep.subr.mxu0 0.0
        %622 = vmatpush1.xpose.msra.mxu0 %v585
        %623 = vmatprep.subr.mxu0 0.0
        %624 = vmatpush1.xpose.msra.mxu0 %v588
        %625 = vmatprep.subr.mxu0 0.0
        %626 = vmatpush1.xpose.msra.mxu0 %v591
        %627 = vmatprep.subr.mxu0 0.0
        %628 = vmatpush1.xpose.msra.mxu0 %v594
        %629 = vmatprep.subr.mxu0 0.0
        %630 = vmatpush1.xpose.msra.mxu0 %v597
        %631 = vmatprep.subr.mxu0 0.0
        %632 = vmatpush1.xpose.msra.mxu0 0.0
        %633 = vmatprep.subr.mxu0 0.0
        %634 = vmatpush1.xpose.msra.mxu0 0.0
        %635 = vmatprep.subr.mxu0 0.0
        %636 = vmatpush1.xpose.msra.mxu0 0.0
        %637 = vmatprep.subr.mxu0 0.0
        %638 = vmatpush1.xpose.msra.mxu0 0.0
        %639 = vmatprep.subr.mxu0 0.0
        %640 = vmatpush1.xpose.msra.mxu0 0.0
        %641 = vmatprep.subr.mxu0 0.0
        %642 = vmatpush1.xpose.msra.mxu0 0.0
        %643 = vmatprep.subr.mxu0 0.0
        %644 = vmatpush1.xpose.msra.mxu0 0.0
        %645 = vmatprep.subr.mxu0 0.0
        %646 = vmatpush1.xpose.msra.mxu0 0.0
        %647 = vmatprep.subr.mxu0 0.0
        %648 = vmatpush1.xpose.msra.mxu0 0.0
        %649 = vmatprep.subr.mxu0 0.0
        %650 = vmatpush1.xpose.msra.mxu0 0.0
        %651 = vmatprep.subr.mxu0 0.0
        %652 = vmatpush1.xpose.msra.mxu0 0.0
        %653 = vmatprep.subr.mxu0 0.0
        %654 = vmatpush1.xpose.msra.mxu0 0.0
        %655 = vmatprep.subr.mxu0 0.0
        %656 = vmatpush1.xpose.msra.mxu0 0.0
        %657 = vmatprep.subr.mxu0 0.0
        %658 = vmatpush1.xpose.msra.mxu0 0.0
        %659 = vmatprep.subr.mxu0 0.0
        %660 = vmatpush1.xpose.msra.mxu0 0.0
        %661 = vmatprep.subr.mxu0 0.0
        %662 = vmatpush1.xpose.msra.mxu0 0.0
        %663 = vmatprep.mubr.f32.mxu0 0.0
        %664 = vmatmul.mubr.f32.gmra.mrb[0].mxu0 %v540
        %v665 = vpop.f32.mrb[0].mxu0
        %v666 = vadd.f32 0.0, %v665
        %v667 = vpop.f32.mrb[0].mxu0
        %668 = vmatprep.mubr.f32.mxu0 0.0
        %669 = vmatmul.mubr.f32.gmra.mrb[0].mxu0 %v543
        %v670 = vpop.f32.mrb[0].mxu0
        %v671 = vadd.f32 0.0, %v670
        %v672 = vpop.f32.mrb[0].mxu0
        %673 = vmatprep.mubr.f32.mxu0 0.0
        %674 = vmatmul.mubr.f32.gmra.mrb[0].mxu0 %v546
        %v675 = vpop.f32.mrb[0].mxu0
        %v676 = vadd.f32 0.0, %v675
        %v677 = vpop.f32.mrb[0].mxu0
        %678 = vmatprep.mubr.f32.mxu0 0.0
        %679 = vmatmul.mubr.f32.gmra.mrb[0].mxu0 %v549
        %v680 = vpop.f32.mrb[0].mxu0
        %v681 = vadd.f32 0.0, %v680
        %v682 = vpop.f32.mrb[0].mxu0
        %683 = vdwg.mxu0
        %v685 = vsel %vm538, %v470, 0
        %v688 = vsel %vm538, %v471, 0
        %v691 = vsel %vm538, %v472, 0
        %v694 = vsel %vm538, %v473, 0
        %v697 = vsel %vm538, %v490, 0
        %v700 = vsel %vm538, %v491, 0
        %v703 = vsel %vm538, %v492, 0
        %v706 = vsel %vm538, %v493, 0
        %v709 = vsel %vm538, %v494, 0
        %v712 = vsel %vm538, %v495, 0
        %v715 = vsel %vm538, %v496, 0
        %v718 = vsel %vm538, %v497, 0
        %v721 = vsel %vm538, %v498, 0
        %v724 = vsel %vm538, %v499, 0
        %v727 = vsel %vm538, %v500, 0
        %v730 = vsel %vm538, %v501, 0
        %v733 = vsel %vm538, %v502, 0
        %v736 = vsel %vm538, %v503, 0
        %v739 = vsel %vm538, %v504, 0
        %v742 = vsel %vm538, %v505, 0
        %744 = vmatprep.subr.mxu0 0.0
        %745 = vmatpush1.xpose.msra.mxu0 %v697
        %746 = vmatprep.subr.mxu0 0.0
        %747 = vmatpush1.xpose.msra.mxu0 %v700
        %748 = vmatprep.subr.mxu0 0.0
        %749 = vmatpush1.xpose.msra.mxu0 %v703
        %750 = vmatprep.subr.mxu0 0.0
        %751 = vmatpush1.xpose.msra.mxu0 %v706
        %752 = vmatprep.subr.mxu0 0.0
        %753 = vmatpush1.xpose.msra.mxu0 %v709
        %754 = vmatprep.subr.mxu0 0.0
        %755 = vmatpush1.xpose.msra.mxu0 %v712
        %756 = vmatprep.subr.mxu0 0.0
        %757 = vmatpush1.xpose.msra.mxu0 %v715
        %758 = vmatprep.subr.mxu0 0.0
        %759 = vmatpush1.xpose.msra.mxu0 %v718
        %760 = vmatprep.subr.mxu0 0.0
        %761 = vmatpush1.xpose.msra.mxu0 %v721
        %762 = vmatprep.subr.mxu0 0.0
        %763 = vmatpush1.xpose.msra.mxu0 %v724
        %764 = vmatprep.subr.mxu0 0.0
        %765 = vmatpush1.xpose.msra.mxu0 %v727
        %766 = vmatprep.subr.mxu0 0.0
        %767 = vmatpush1.xpose.msra.mxu0 %v730
        %768 = vmatprep.subr.mxu0 0.0
        %769 = vmatpush1.xpose.msra.mxu0 %v733
        %770 = vmatprep.subr.mxu0 0.0
        %771 = vmatpush1.xpose.msra.mxu0 %v736
        %772 = vmatprep.subr.mxu0 0.0
        %773 = vmatpush1.xpose.msra.mxu0 %v739
        %774 = vmatprep.subr.mxu0 0.0
        %775 = vmatpush1.xpose.msra.mxu0 %v742
        %776 = vmatprep.subr.mxu0 0.0
        %777 = vmatpush1.xpose.msra.mxu0 0.0
        %778 = vmatprep.subr.mxu0 0.0
        %779 = vmatpush1.xpose.msra.mxu0 0.0
        %780 = vmatprep.subr.mxu0 0.0
        %781 = vmatpush1.xpose.msra.mxu0 0.0
        %782 = vmatprep.subr.mxu0 0.0
        %783 = vmatpush1.xpose.msra.mxu0 0.0
        %784 = vmatprep.subr.mxu0 0.0
        %785 = vmatpush1.xpose.msra.mxu0 0.0
        %786 = vmatprep.subr.mxu0 0.0
        %787 = vmatpush1.xpose.msra.mxu0 0.0
        %788 = vmatprep.subr.mxu0 0.0
        %789 = vmatpush1.xpose.msra.mxu0 0.0
        %790 = vmatprep.subr.mxu0 0.0
        %791 = vmatpush1.xpose.msra.mxu0 0.0
        %792 = vmatprep.subr.mxu0 0.0
        %793 = vmatpush1.xpose.msra.mxu0 0.0
        %794 = vmatprep.subr.mxu0 0.0
        %795 = vmatpush1.xpose.msra.mxu0 0.0
        %796 = vmatprep.subr.mxu0 0.0
        %797 = vmatpush1.xpose.msra.mxu0 0.0
        %798 = vmatprep.subr.mxu0 0.0
        %799 = vmatpush1.xpose.msra.mxu0 0.0
        %800 = vmatprep.subr.mxu0 0.0
        %801 = vmatpush1.xpose.msra.mxu0 0.0
        %802 = vmatprep.subr.mxu0 0.0
        %803 = vmatpush1.xpose.msra.mxu0 0.0
        %804 = vmatprep.subr.mxu0 0.0
        %805 = vmatpush1.xpose.msra.mxu0 0.0
        %806 = vmatprep.subr.mxu0 0.0
        %807 = vmatpush1.xpose.msra.mxu0 0.0
        %808 = vmatprep.mubr.f32.mxu0 0.0
        %809 = vmatmul.mubr.f32.gmra.mrb[0].mxu0 %v685
        %v810 = vpop.f32.mrb[0].mxu0
        %v811 = vadd.f32 0.0, %v810
        %v812 = vpop.f32.mrb[0].mxu0
        %813 = vmatprep.mubr.f32.mxu0 0.0
        %814 = vmatmul.mubr.f32.gmra.mrb[0].mxu0 %v688
        %v815 = vpop.f32.mrb[0].mxu0
        %v816 = vadd.f32 0.0, %v815
        %v817 = vpop.f32.mrb[0].mxu0
        %818 = vmatprep.mubr.f32.mxu0 0.0
        %819 = vmatmul.mubr.f32.gmra.mrb[0].mxu0 %v691
        %v820 = vpop.f32.mrb[0].mxu0
        %v821 = vadd.f32 0.0, %v820
        %v822 = vpop.f32.mrb[0].mxu0
        %823 = vmatprep.mubr.f32.mxu0 0.0
        %824 = vmatmul.mubr.f32.gmra.mrb[0].mxu0 %v694
        %v825 = vpop.f32.mrb[0].mxu0
        %v826 = vadd.f32 0.0, %v825
        %v827 = vpop.f32.mrb[0].mxu0
        %828 = vdwg.mxu0
        %s829 = smul.u32 %s28, 128
        %v830 = vlaneseq
        %v831 = vand.u32 %v830, 127
        %v832 = vstv %s829
        %v833 = vadd.s32 %v832, %v831
        %vm834 = vcmp.lt.s32.totalorder %v833, 8
        %v835 = vsel %vm834, 1, 0
        %vm836 = vcmp.eq.s32.totalorder %v835, 1
        %v837 = vsel %vm836, %v666, -inf
        %v838 = vsel %vm836, %v671, -inf
        %v839 = vsel %vm836, %v676, -inf
        %v840 = vsel %vm836, %v681, -inf
        %v841 = vsel %vm836, %v811, -inf
        %v842 = vsel %vm836, %v816, -inf
        %v843 = vsel %vm836, %v821, -inf
        %v844 = vsel %vm836, %v826, -inf
        %v845 = vld [vmem:[#allocation2] sm:$0xff]
        %v846 = vld [vmem:[#allocation2 + $0x8] sm:$0xff]
        %v847 = vld [vmem:[#allocation2 + $0x10] sm:$0xff]
        %v848 = vld [vmem:[#allocation2 + $0x18] sm:$0xff]
        %v849 = vld [vmem:[#allocation2 + $0x20] sm:$0xff]
        %v850 = vld [vmem:[#allocation2 + $0x28] sm:$0xff]
        %v851 = vld [vmem:[#allocation2 + $0x30] sm:$0xff]
        %v852 = vld [vmem:[#allocation2 + $0x38] sm:$0xff]
        %853 = vmax.xlane.f32.xlu0 %v837
        %v854 = vpop.xlane.xlu0 %853
        %855 = vmax.xlane.f32.xlu0 %v838
        %v856 = vpop.xlane.xlu0 %855
        %857 = vmax.xlane.f32.xlu0 %v839
        %v858 = vpop.xlane.xlu0 %857
        %859 = vmax.xlane.f32.xlu0 %v840
        %v860 = vpop.xlane.xlu0 %859
        %861 = vmax.xlane.f32.xlu0 %v841
        %v862 = vpop.xlane.xlu0 %861
        %863 = vmax.xlane.f32.xlu0 %v842
        %v864 = vpop.xlane.xlu0 %863
        %865 = vmax.xlane.f32.xlu0 %v843
        %v866 = vpop.xlane.xlu0 %865
        %867 = vmax.xlane.f32.xlu0 %v844
        %v868 = vpop.xlane.xlu0 %867
        %v869 = vmax.f32 %v845, %v854
        %v870 = vmax.f32 %v846, %v856
        %v871 = vmax.f32 %v847, %v858
        %v872 = vmax.f32 %v848, %v860
        %v873 = vmax.f32 %v849, %v862
        %v874 = vmax.f32 %v850, %v864
        %v875 = vmax.f32 %v851, %v866
        %v876 = vmax.f32 %v852, %v868
        %v877 = vsub.f32 %v845, %v869
        %v878 = vsub.f32 %v846, %v870
        %v879 = vsub.f32 %v847, %v871
        %v880 = vsub.f32 %v848, %v872
        %v881 = vsub.f32 %v849, %v873
        %v882 = vsub.f32 %v850, %v874
        %v883 = vsub.f32 %v851, %v875
        %v884 = vsub.f32 %v852, %v876
        %v885 = vmul.f32 %v877, 1.442695
        %v886 = vpow.pop %v885
        %v887 = vmul.f32 %v878, 1.442695
        %v888 = vpow.pop %v887
        %v889 = vmul.f32 %v879, 1.442695
        %v890 = vpow.pop %v889
        %v891 = vmul.f32 %v880, 1.442695
        %v892 = vpow.pop %v891
        %v893 = vmul.f32 %v881, 1.442695
        %v894 = vpow.pop %v893
        %v895 = vmul.f32 %v882, 1.442695
        %v896 = vpow.pop %v895
        %v897 = vmul.f32 %v883, 1.442695
        %v898 = vpow.pop %v897
        %v899 = vmul.f32 %v884, 1.442695
        %v900 = vpow.pop %v899
        %902 = vset.pattern.permute.xlu0 0
        %903 = vperm.xlu0 %902, %v869
        %v904 = vpop.permute.xlu0 %903
        %907 = vset.pattern.permute.xlu0 0
        %908 = vperm.xlu0 %907, %v870
        %v909 = vpop.permute.xlu0 %908
        %912 = vset.pattern.permute.xlu0 0
        %913 = vperm.xlu0 %912, %v871
        %v914 = vpop.permute.xlu0 %913
        %917 = vset.pattern.permute.xlu0 0
        %918 = vperm.xlu0 %917, %v872
        %v919 = vpop.permute.xlu0 %918
        %922 = vset.pattern.permute.xlu0 0
        %923 = vperm.xlu0 %922, %v873
        %v924 = vpop.permute.xlu0 %923
        %927 = vset.pattern.permute.xlu0 0
        %928 = vperm.xlu0 %927, %v874
        %v929 = vpop.permute.xlu0 %928
        %932 = vset.pattern.permute.xlu0 0
        %933 = vperm.xlu0 %932, %v875
        %v934 = vpop.permute.xlu0 %933
        %937 = vset.pattern.permute.xlu0 0
        %938 = vperm.xlu0 %937, %v876
        %v939 = vpop.permute.xlu0 %938
        %v941 = vsub.f32 %v837, %v904
        %v942 = vsub.f32 %v838, %v909
        %v943 = vsub.f32 %v839, %v914
        %v944 = vsub.f32 %v840, %v919
        %v945 = vsub.f32 %v841, %v924
        %v946 = vsub.f32 %v842, %v929
        %v947 = vsub.f32 %v843, %v934
        %v948 = vsub.f32 %v844, %v939
        %v949 = vmul.f32 %v941, 1.442695
        %v950 = vpow.pop %v949
        %v951 = vmul.f32 %v942, 1.442695
        %v952 = vpow.pop %v951
        %v953 = vmul.f32 %v943, 1.442695
        %v954 = vpow.pop %v953
        %v955 = vmul.f32 %v944, 1.442695
        %v956 = vpow.pop %v955
        %v957 = vmul.f32 %v945, 1.442695
        %v958 = vpow.pop %v957
        %v959 = vmul.f32 %v946, 1.442695
        %v960 = vpow.pop %v959
        %v961 = vmul.f32 %v947, 1.442695
        %v962 = vpow.pop %v961
        %v963 = vmul.f32 %v948, 1.442695
        %v964 = vpow.pop %v963
        %v965 = vld [vmem:[#allocation3] sm:$0xff]
        %v966 = vld [vmem:[#allocation3 + $0x8] sm:$0xff]
        %v967 = vld [vmem:[#allocation3 + $0x10] sm:$0xff]
        %v968 = vld [vmem:[#allocation3 + $0x18] sm:$0xff]
        %v969 = vld [vmem:[#allocation3 + $0x20] sm:$0xff]
        %v970 = vld [vmem:[#allocation3 + $0x28] sm:$0xff]
        %v971 = vld [vmem:[#allocation3 + $0x30] sm:$0xff]
        %v972 = vld [vmem:[#allocation3 + $0x38] sm:$0xff]
        %v973 = vmul.f32 %v886, %v965
        %v974 = vmul.f32 %v888, %v966
        %v975 = vmul.f32 %v890, %v967
        %v976 = vmul.f32 %v892, %v968
        %v977 = vmul.f32 %v894, %v969
        %v978 = vmul.f32 %v896, %v970
        %v979 = vmul.f32 %v898, %v971
        %v980 = vmul.f32 %v900, %v972
        %981 = vadd.xlane.f32.xlu0 %v950
        %v982 = vpop.xlane.xlu0 %981
        %983 = vadd.xlane.f32.xlu0 %v952
        %v984 = vpop.xlane.xlu0 %983
        %985 = vadd.xlane.f32.xlu0 %v954
        %v986 = vpop.xlane.xlu0 %985
        %987 = vadd.xlane.f32.xlu0 %v956
        %v988 = vpop.xlane.xlu0 %987
        %989 = vadd.xlane.f32.xlu0 %v958
        %v990 = vpop.xlane.xlu0 %989
        %991 = vadd.xlane.f32.xlu0 %v960
        %v992 = vpop.xlane.xlu0 %991
        %993 = vadd.xlane.f32.xlu0 %v962
        %v994 = vpop.xlane.xlu0 %993
        %995 = vadd.xlane.f32.xlu0 %v964
        %v996 = vpop.xlane.xlu0 %995
        %v997 = vadd.f32 %v973, %v982
        %v998 = vadd.f32 %v974, %v984
        %v999 = vadd.f32 %v975, %v986
        %v1000 = vadd.f32 %v976, %v988
        %v1001 = vadd.f32 %v977, %v990
        %v1002 = vadd.f32 %v978, %v992
        %v1003 = vadd.f32 %v979, %v994
        %v1004 = vadd.f32 %v980, %v996
        %vm1005 = vcmask 7168
        %1006 = vst.msk [vmem:[#allocation3] sm:$0xff] %vm1005, %v997
        %1007 = vst.msk [vmem:[#allocation3 + $0x8] sm:$0xff] %vm1005, %v998
        %1008 = vst.msk [vmem:[#allocation3 + $0x10] sm:$0xff] %vm1005, %v999
        %1009 = vst.msk [vmem:[#allocation3 + $0x18] sm:$0xff] %vm1005, %v1000
        %1010 = vst.msk [vmem:[#allocation3 + $0x20] sm:$0xff] %vm1005, %v1001
        %1011 = vst.msk [vmem:[#allocation3 + $0x28] sm:$0xff] %vm1005, %v1002
        %1012 = vst.msk [vmem:[#allocation3 + $0x30] sm:$0xff] %vm1005, %v1003
        %1013 = vst.msk [vmem:[#allocation3 + $0x38] sm:$0xff] %vm1005, %v1004
        %v1014 = vld [vmem:[#allocation4] sm:$0xff]
        %v1015 = vld [vmem:[#allocation4 + $0x8] sm:$0xff]
        %v1016 = vld [vmem:[#allocation4 + $0x10] sm:$0xff]
        %v1017 = vld [vmem:[#allocation4 + $0x18] sm:$0xff]
        %v1018 = vld [vmem:[#allocation4 + $0x20] sm:$0xff]
        %v1019 = vld [vmem:[#allocation4 + $0x28] sm:$0xff]
        %v1020 = vld [vmem:[#allocation4 + $0x30] sm:$0xff]
        %v1021 = vld [vmem:[#allocation4 + $0x38] sm:$0xff]
        %1023 = vset.pattern.permute.xlu0 0
        %1024 = vperm.xlu0 %1023, %v886
        %v1025 = vpop.permute.xlu0 %1024
        %1028 = vset.pattern.permute.xlu0 0
        %1029 = vperm.xlu0 %1028, %v888
        %v1030 = vpop.permute.xlu0 %1029
        %1033 = vset.pattern.permute.xlu0 0
        %1034 = vperm.xlu0 %1033, %v890
        %v1035 = vpop.permute.xlu0 %1034
        %1038 = vset.pattern.permute.xlu0 0
        %1039 = vperm.xlu0 %1038, %v892
        %v1040 = vpop.permute.xlu0 %1039
        %1043 = vset.pattern.permute.xlu0 0
        %1044 = vperm.xlu0 %1043, %v894
        %v1045 = vpop.permute.xlu0 %1044
        %1048 = vset.pattern.permute.xlu0 0
        %1049 = vperm.xlu0 %1048, %v896
        %v1050 = vpop.permute.xlu0 %1049
        %1053 = vset.pattern.permute.xlu0 0
        %1054 = vperm.xlu0 %1053, %v898
        %v1055 = vpop.permute.xlu0 %1054
        %1058 = vset.pattern.permute.xlu0 0
        %1059 = vperm.xlu0 %1058, %v900
        %v1060 = vpop.permute.xlu0 %1059
        %v1062 = vmul.f32 %v1025, %v1014
        %v1063 = vmul.f32 %v1030, %v1015
        %v1064 = vmul.f32 %v1035, %v1016
        %v1065 = vmul.f32 %v1040, %v1017
        %v1066 = vmul.f32 %v1045, %v1018
        %v1067 = vmul.f32 %v1050, %v1019
        %v1068 = vmul.f32 %v1055, %v1020
        %v1069 = vmul.f32 %v1060, %v1021
        %1070 = vmatprep.subr.mxu0 0.0
        %1071 = vmatpush1.msra.mxu0 %v506
        %1072 = vmatprep.subr.mxu0 0.0
        %1073 = vmatpush1.msra.mxu0 %v507
        %1074 = vmatprep.subr.mxu0 0.0
        %1075 = vmatpush1.msra.mxu0 %v508
        %1076 = vmatprep.subr.mxu0 0.0
        %1077 = vmatpush1.msra.mxu0 %v509
        %1078 = vmatprep.subr.mxu0 0.0
        %1079 = vmatpush1.msra.mxu0 %v510
        %1080 = vmatprep.subr.mxu0 0.0
        %1081 = vmatpush1.msra.mxu0 %v511
        %1082 = vmatprep.subr.mxu0 0.0
        %1083 = vmatpush1.msra.mxu0 %v512
        %1084 = vmatprep.subr.mxu0 0.0
        %1085 = vmatpush1.msra.mxu0 %v513
        %1086 = vmatprep.subr.mxu0 0.0
        %1087 = vmatpush1.msra.mxu0 %v514
        %1088 = vmatprep.subr.mxu0 0.0
        %1089 = vmatpush1.msra.mxu0 %v515
        %1090 = vmatprep.subr.mxu0 0.0
        %1091 = vmatpush1.msra.mxu0 %v516
        %1092 = vmatprep.subr.mxu0 0.0
        %1093 = vmatpush1.msra.mxu0 %v517
        %1094 = vmatprep.subr.mxu0 0.0
        %1095 = vmatpush1.msra.mxu0 %v518
        %1096 = vmatprep.subr.mxu0 0.0
        %1097 = vmatpush1.msra.mxu0 %v519
        %1098 = vmatprep.subr.mxu0 0.0
        %1099 = vmatpush1.msra.mxu0 %v520
        %1100 = vmatprep.subr.mxu0 0.0
        %1101 = vmatpush1.msra.mxu0 %v521
        %1102 = vmatprep.subr.mxu0 0.0
        %1103 = vmatpush1.msra.mxu0 0.0
        %1104 = vmatprep.subr.mxu0 0.0
        %1105 = vmatpush1.msra.mxu0 0.0
        %1106 = vmatprep.subr.mxu0 0.0
        %1107 = vmatpush1.msra.mxu0 0.0
        %1108 = vmatprep.subr.mxu0 0.0
        %1109 = vmatpush1.msra.mxu0 0.0
        %1110 = vmatprep.subr.mxu0 0.0
        %1111 = vmatpush1.msra.mxu0 0.0
        %1112 = vmatprep.subr.mxu0 0.0
        %1113 = vmatpush1.msra.mxu0 0.0
        %1114 = vmatprep.subr.mxu0 0.0
        %1115 = vmatpush1.msra.mxu0 0.0
        %1116 = vmatprep.subr.mxu0 0.0
        %1117 = vmatpush1.msra.mxu0 0.0
        %1118 = vmatprep.subr.mxu0 0.0
        %1119 = vmatpush1.msra.mxu0 0.0
        %1120 = vmatprep.subr.mxu0 0.0
        %1121 = vmatpush1.msra.mxu0 0.0
        %1122 = vmatprep.subr.mxu0 0.0
        %1123 = vmatpush1.msra.mxu0 0.0
        %1124 = vmatprep.subr.mxu0 0.0
        %1125 = vmatpush1.msra.mxu0 0.0
        %1126 = vmatprep.subr.mxu0 0.0
        %1127 = vmatpush1.msra.mxu0 0.0
        %1128 = vmatprep.subr.mxu0 0.0
        %1129 = vmatpush1.msra.mxu0 0.0
        %1130 = vmatprep.subr.mxu0 0.0
        %1131 = vmatpush1.msra.mxu0 0.0
        %1132 = vmatprep.subr.mxu0 0.0
        %1133 = vmatpush1.msra.mxu0 0.0
        %1134 = vmatprep.mubr.f32.mxu0 0.0
        %1135 = vmatmul.mubr.f32.gmra.mrb[0].mxu0 %v950
        %v1136 = vpop.f32.mrb[0].mxu0
        %v1137 = vadd.f32 0.0, %v1136
        %v1138 = vpop.f32.mrb[0].mxu0
        %1139 = vmatprep.mubr.f32.mxu0 0.0
        %1140 = vmatmul.mubr.f32.gmra.mrb[0].mxu0 %v952
        %v1141 = vpop.f32.mrb[0].mxu0
        %v1142 = vadd.f32 0.0, %v1141
        %v1143 = vpop.f32.mrb[0].mxu0
        %1144 = vmatprep.mubr.f32.mxu0 0.0
        %1145 = vmatmul.mubr.f32.gmra.mrb[0].mxu0 %v954
        %v1146 = vpop.f32.mrb[0].mxu0
        %v1147 = vadd.f32 0.0, %v1146
        %v1148 = vpop.f32.mrb[0].mxu0
        %1149 = vmatprep.mubr.f32.mxu0 0.0
        %1150 = vmatmul.mubr.f32.gmra.mrb[0].mxu0 %v956
        %v1151 = vpop.f32.mrb[0].mxu0
        %v1152 = vadd.f32 0.0, %v1151
        %v1153 = vpop.f32.mrb[0].mxu0
        %1154 = vdwg.mxu0
        %1155 = vmatprep.subr.mxu0 0.0
        %1156 = vmatpush1.msra.mxu0 %v522
        %1157 = vmatprep.subr.mxu0 0.0
        %1158 = vmatpush1.msra.mxu0 %v523
        %1159 = vmatprep.subr.mxu0 0.0
        %1160 = vmatpush1.msra.mxu0 %v524
        %1161 = vmatprep.subr.mxu0 0.0
        %1162 = vmatpush1.msra.mxu0 %v525
        %1163 = vmatprep.subr.mxu0 0.0
        %1164 = vmatpush1.msra.mxu0 %v526
        %1165 = vmatprep.subr.mxu0 0.0
        %1166 = vmatpush1.msra.mxu0 %v527
        %1167 = vmatprep.subr.mxu0 0.0
        %1168 = vmatpush1.msra.mxu0 %v528
        %1169 = vmatprep.subr.mxu0 0.0
        %1170 = vmatpush1.msra.mxu0 %v529
        %1171 = vmatprep.subr.mxu0 0.0
        %1172 = vmatpush1.msra.mxu0 %v530
        %1173 = vmatprep.subr.mxu0 0.0
        %1174 = vmatpush1.msra.mxu0 %v531
        %1175 = vmatprep.subr.mxu0 0.0
        %1176 = vmatpush1.msra.mxu0 %v532
        %1177 = vmatprep.subr.mxu0 0.0
        %1178 = vmatpush1.msra.mxu0 %v533
        %1179 = vmatprep.subr.mxu0 0.0
        %1180 = vmatpush1.msra.mxu0 %v534
        %1181 = vmatprep.subr.mxu0 0.0
        %1182 = vmatpush1.msra.mxu0 %v535
        %1183 = vmatprep.subr.mxu0 0.0
        %1184 = vmatpush1.msra.mxu0 %v536
        %1185 = vmatprep.subr.mxu0 0.0
        %1186 = vmatpush1.msra.mxu0 %v537
        %1187 = vmatprep.subr.mxu0 0.0
        %1188 = vmatpush1.msra.mxu0 0.0
        %1189 = vmatprep.subr.mxu0 0.0
        %1190 = vmatpush1.msra.mxu0 0.0
        %1191 = vmatprep.subr.mxu0 0.0
        %1192 = vmatpush1.msra.mxu0 0.0
        %1193 = vmatprep.subr.mxu0 0.0
        %1194 = vmatpush1.msra.mxu0 0.0
        %1195 = vmatprep.subr.mxu0 0.0
        %1196 = vmatpush1.msra.mxu0 0.0
        %1197 = vmatprep.subr.mxu0 0.0
        %1198 = vmatpush1.msra.mxu0 0.0
        %1199 = vmatprep.subr.mxu0 0.0
        %1200 = vmatpush1.msra.mxu0 0.0
        %1201 = vmatprep.subr.mxu0 0.0
        %1202 = vmatpush1.msra.mxu0 0.0
        %1203 = vmatprep.subr.mxu0 0.0
        %1204 = vmatpush1.msra.mxu0 0.0
        %1205 = vmatprep.subr.mxu0 0.0
        %1206 = vmatpush1.msra.mxu0 0.0
        %1207 = vmatprep.subr.mxu0 0.0
        %1208 = vmatpush1.msra.mxu0 0.0
        %1209 = vmatprep.subr.mxu0 0.0
        %1210 = vmatpush1.msra.mxu0 0.0
        %1211 = vmatprep.subr.mxu0 0.0
        %1212 = vmatpush1.msra.mxu0 0.0
        %1213 = vmatprep.subr.mxu0 0.0
        %1214 = vmatpush1.msra.mxu0 0.0
        %1215 = vmatprep.subr.mxu0 0.0
        %1216 = vmatpush1.msra.mxu0 0.0
        %1217 = vmatprep.subr.mxu0 0.0
        %1218 = vmatpush1.msra.mxu0 0.0
        %1219 = vmatprep.mubr.f32.mxu0 0.0
        %1220 = vmatmul.mubr.f32.gmra.mrb[0].mxu0 %v958
        %v1221 = vpop.f32.mrb[0].mxu0
        %v1222 = vadd.f32 0.0, %v1221
        %v1223 = vpop.f32.mrb[0].mxu0
        %1224 = vmatprep.mubr.f32.mxu0 0.0
        %1225 = vmatmul.mubr.f32.gmra.mrb[0].mxu0 %v960
        %v1226 = vpop.f32.mrb[0].mxu0
        %v1227 = vadd.f32 0.0, %v1226
        %v1228 = vpop.f32.mrb[0].mxu0
        %1229 = vmatprep.mubr.f32.mxu0 0.0
        %1230 = vmatmul.mubr.f32.gmra.mrb[0].mxu0 %v962
        %v1231 = vpop.f32.mrb[0].mxu0
        %v1232 = vadd.f32 0.0, %v1231
        %v1233 = vpop.f32.mrb[0].mxu0
        %1234 = vmatprep.mubr.f32.mxu0 0.0
        %1235 = vmatmul.mubr.f32.gmra.mrb[0].mxu0 %v964
        %v1236 = vpop.f32.mrb[0].mxu0
        %v1237 = vadd.f32 0.0, %v1236
        %v1238 = vpop.f32.mrb[0].mxu0
        %1239 = vdwg.mxu0
        %v1240 = vadd.f32 %v1062, %v1137
        %v1241 = vadd.f32 %v1063, %v1142
        %v1242 = vadd.f32 %v1064, %v1147
        %v1243 = vadd.f32 %v1065, %v1152
        %v1244 = vadd.f32 %v1066, %v1222
        %v1245 = vadd.f32 %v1067, %v1227
        %v1246 = vadd.f32 %v1068, %v1232
        %v1247 = vadd.f32 %v1069, %v1237
        %1248 = vst.msk [vmem:[#allocation4] sm:$0xff] %vm538, %v1240
        %1249 = vst.msk [vmem:[#allocation4 + $0x8] sm:$0xff] %vm538, %v1241
        %1250 = vst.msk [vmem:[#allocation4 + $0x10] sm:$0xff] %vm538, %v1242
        %1251 = vst.msk [vmem:[#allocation4 + $0x18] sm:$0xff] %vm538, %v1243
        %1252 = vst.msk [vmem:[#allocation4 + $0x20] sm:$0xff] %vm538, %v1244
        %1253 = vst.msk [vmem:[#allocation4 + $0x28] sm:$0xff] %vm538, %v1245
        %1254 = vst.msk [vmem:[#allocation4 + $0x30] sm:$0xff] %vm538, %v1246
        %1255 = vst.msk [vmem:[#allocation4 + $0x38] sm:$0xff] %vm538, %v1247
        %1256 = vst.msk [vmem:[#allocation2] sm:$0xff] %vm1005, %v869
        %1257 = vst.msk [vmem:[#allocation2 + $0x8] sm:$0xff] %vm1005, %v870
        %1258 = vst.msk [vmem:[#allocation2 + $0x10] sm:$0xff] %vm1005, %v871
        %1259 = vst.msk [vmem:[#allocation2 + $0x18] sm:$0xff] %vm1005, %v872
        %1260 = vst.msk [vmem:[#allocation2 + $0x20] sm:$0xff] %vm1005, %v873
        %1261 = vst.msk [vmem:[#allocation2 + $0x28] sm:$0xff] %vm1005, %v874
        %1262 = vst.msk [vmem:[#allocation2 + $0x30] sm:$0xff] %vm1005, %v875
        %1263 = vst.msk [vmem:[#allocation2 + $0x38] sm:$0xff] %vm1005, %v876
        // Predicated region
        $region49: #{tpu_custom_call.1} parent=39 // pred_check
          %p1264 = pneg %p420
        $region50: #{tpu_custom_call.1} parent=39 // pred_check_branch
          %1266 = sbr.rel (%p1264) target = $region52
        $region51: #{tpu_custom_call.1} parent=39 // pred_region
          %v1267 = vld [vmem:[#allocation4] sm:$0xff]
          %v1268 = vld [vmem:[#allocation4 + $0x8] sm:$0xff]
          %v1269 = vld [vmem:[#allocation4 + $0x10] sm:$0xff]
          %v1270 = vld [vmem:[#allocation4 + $0x18] sm:$0xff]
          %v1271 = vld [vmem:[#allocation4 + $0x20] sm:$0xff]
          %v1272 = vld [vmem:[#allocation4 + $0x28] sm:$0xff]
          %v1273 = vld [vmem:[#allocation4 + $0x30] sm:$0xff]
          %v1274 = vld [vmem:[#allocation4 + $0x38] sm:$0xff]
          %v1275 = vld [vmem:[#allocation3] sm:$0xff]
          %v1276 = vld [vmem:[#allocation3 + $0x8] sm:$0xff]
          %v1277 = vld [vmem:[#allocation3 + $0x10] sm:$0xff]
          %v1278 = vld [vmem:[#allocation3 + $0x18] sm:$0xff]
          %v1279 = vld [vmem:[#allocation3 + $0x20] sm:$0xff]
          %v1280 = vld [vmem:[#allocation3 + $0x28] sm:$0xff]
          %v1281 = vld [vmem:[#allocation3 + $0x30] sm:$0xff]
          %v1282 = vld [vmem:[#allocation3 + $0x38] sm:$0xff]
          %v1283 = vrcp.pop %v1275
          %v1284 = vmul.f32 1.0, %v1283
          %v1285 = vrcp.pop %v1276
          %v1286 = vmul.f32 1.0, %v1285
          %v1287 = vrcp.pop %v1277
          %v1288 = vmul.f32 1.0, %v1287
          %v1289 = vrcp.pop %v1278
          %v1290 = vmul.f32 1.0, %v1289
          %v1291 = vrcp.pop %v1279
          %v1292 = vmul.f32 1.0, %v1291
          %v1293 = vrcp.pop %v1280
          %v1294 = vmul.f32 1.0, %v1293
          %v1295 = vrcp.pop %v1281
          %v1296 = vmul.f32 1.0, %v1295
          %v1297 = vrcp.pop %v1282
          %v1298 = vmul.f32 1.0, %v1297
          %1300 = vset.pattern.permute.xlu0 0
          %1301 = vperm.xlu0 %1300, %v1284
          %v1302 = vpop.permute.xlu0 %1301
          %1305 = vset.pattern.permute.xlu0 0
          %1306 = vperm.xlu0 %1305, %v1286
          %v1307 = vpop.permute.xlu0 %1306
          %1310 = vset.pattern.permute.xlu0 0
          %1311 = vperm.xlu0 %1310, %v1288
          %v1312 = vpop.permute.xlu0 %1311
          %1315 = vset.pattern.permute.xlu0 0
          %1316 = vperm.xlu0 %1315, %v1290
          %v1317 = vpop.permute.xlu0 %1316
          %1320 = vset.pattern.permute.xlu0 0
          %1321 = vperm.xlu0 %1320, %v1292
          %v1322 = vpop.permute.xlu0 %1321
          %1325 = vset.pattern.permute.xlu0 0
          %1326 = vperm.xlu0 %1325, %v1294
          %v1327 = vpop.permute.xlu0 %1326
          %1330 = vset.pattern.permute.xlu0 0
          %1331 = vperm.xlu0 %1330, %v1296
          %v1332 = vpop.permute.xlu0 %1331
          %1335 = vset.pattern.permute.xlu0 0
          %1336 = vperm.xlu0 %1335, %v1298
          %v1337 = vpop.permute.xlu0 %1336
          %v1339 = vmul.f32 %v1267, %v1302
          %v1340 = vmul.f32 %v1268, %v1307
          %v1341 = vmul.f32 %v1269, %v1312
          %v1342 = vmul.f32 %v1270, %v1317
          %v1343 = vmul.f32 %v1271, %v1322
          %v1344 = vmul.f32 %v1272, %v1327
          %v1345 = vmul.f32 %v1273, %v1332
          %v1346 = vmul.f32 %v1274, %v1337
          %1351 = vrot.lane.b32.xlu0 %v1343, 16
          %v1352 = vpop.permute.xlu0 %1351
          %1353 = vrot.lane.b32.xlu0 %v1344, 16
          %v1354 = vpop.permute.xlu0 %1353
          %1355 = vrot.lane.b32.xlu0 %v1345, 16
          %v1356 = vpop.permute.xlu0 %1355
          %1357 = vrot.lane.b32.xlu0 %v1346, 16
          %v1358 = vpop.permute.xlu0 %1357
          %v1363 = vsel %vm538, %v1339, %v1352
          %v1364 = vsel %vm538, %v1340, %v1354
          %v1365 = vsel %vm538, %v1341, %v1356
          %v1366 = vsel %vm538, %v1342, %v1358
          %v1367 = vld [vmem:[#allocation5] sm:$0xff]
          %v1368 = vld [vmem:[#allocation5 + $0x8] sm:$0xff]
          %v1369 = vld [vmem:[#allocation5 + $0x10] sm:$0xff]
          %v1370 = vld [vmem:[#allocation5 + $0x18] sm:$0xff]
          %v1371 = vld [vmem:[%s416] sm:$0xff]
          %v1372 = vld [vmem:[%s416 + $0x8] sm:$0xff]
          %v1373 = vld [vmem:[%s416 + $0x10] sm:$0xff]
          %v1374 = vld [vmem:[%s416 + $0x18] sm:$0xff]
          %vm1375 = vcmask 261120
          %v1377 = vsel %vm1375, %v1363, 0
          %v1380 = vsel %vm1375, %v1364, 0
          %v1383 = vsel %vm1375, %v1365, 0
          %v1386 = vsel %vm1375, %v1366, 0
          %1388 = vmatprep.subr.mxu0 0.0
          %1389 = vmatpush1.msra.mxu0 %v1371
          %1390 = vmatprep.subr.mxu0 0.0
          %1391 = vmatpush1.msra.mxu0 %v1372
          %1392 = vmatprep.subr.mxu0 0.0
          %1393 = vmatpush1.msra.mxu0 %v1373
          %1394 = vmatprep.subr.mxu0 0.0
          %1395 = vmatpush1.msra.mxu0 %v1374
          %1396 = vmatprep.subr.mxu0 0.0
          %1397 = vmatpush1.msra.mxu0 0.0
          %1398 = vmatprep.subr.mxu0 0.0
          %1399 = vmatpush1.msra.mxu0 0.0
          %1400 = vmatprep.subr.mxu0 0.0
          %1401 = vmatpush1.msra.mxu0 0.0
          %1402 = vmatprep.subr.mxu0 0.0
          %1403 = vmatpush1.msra.mxu0 0.0
          %1404 = vmatprep.subr.mxu0 0.0
          %1405 = vmatpush1.msra.mxu0 0.0
          %1406 = vmatprep.subr.mxu0 0.0
          %1407 = vmatpush1.msra.mxu0 0.0
          %1408 = vmatprep.subr.mxu0 0.0
          %1409 = vmatpush1.msra.mxu0 0.0
          %1410 = vmatprep.subr.mxu0 0.0
          %1411 = vmatpush1.msra.mxu0 0.0
          %1412 = vmatprep.subr.mxu0 0.0
          %1413 = vmatpush1.msra.mxu0 0.0
          %1414 = vmatprep.subr.mxu0 0.0
          %1415 = vmatpush1.msra.mxu0 0.0
          %1416 = vmatprep.subr.mxu0 0.0
          %1417 = vmatpush1.msra.mxu0 0.0
          %1418 = vmatprep.subr.mxu0 0.0
          %1419 = vmatpush1.msra.mxu0 0.0
          %1420 = vmatprep.subr.mxu0 0.0
          %1421 = vmatpush1.msra.mxu0 0.0
          %1422 = vmatprep.subr.mxu0 0.0
          %1423 = vmatpush1.msra.mxu0 0.0
          %1424 = vmatprep.subr.mxu0 0.0
          %1425 = vmatpush1.msra.mxu0 0.0
          %1426 = vmatprep.subr.mxu0 0.0
          %1427 = vmatpush1.msra.mxu0 0.0
          %1428 = vmatprep.subr.mxu0 0.0
          %1429 = vmatpush1.msra.mxu0 0.0
          %1430 = vmatprep.subr.mxu0 0.0
          %1431 = vmatpush1.msra.mxu0 0.0
          %1432 = vmatprep.subr.mxu0 0.0
          %1433 = vmatpush1.msra.mxu0 0.0
          %1434 = vmatprep.subr.mxu0 0.0
          %1435 = vmatpush1.msra.mxu0 0.0
          %1436 = vmatprep.subr.mxu0 0.0
          %1437 = vmatpush1.msra.mxu0 0.0
          %1438 = vmatprep.subr.mxu0 0.0
          %1439 = vmatpush1.msra.mxu0 0.0
          %1440 = vmatprep.subr.mxu0 0.0
          %1441 = vmatpush1.msra.mxu0 0.0
          %1442 = vmatprep.subr.mxu0 0.0
          %1443 = vmatpush1.msra.mxu0 0.0
          %1444 = vmatprep.subr.mxu0 0.0
          %1445 = vmatpush1.msra.mxu0 0.0
          %1446 = vmatprep.subr.mxu0 0.0
          %1447 = vmatpush1.msra.mxu0 0.0
          %1448 = vmatprep.subr.mxu0 0.0
          %1449 = vmatpush1.msra.mxu0 0.0
          %1450 = vmatprep.subr.mxu0 0.0
          %1451 = vmatpush1.msra.mxu0 0.0
          %1452 = vmatprep.mubr.f32.mxu0 0.0
          %1453 = vmatmul.mubr.f32.gmra.mrb[0].mxu0 %v1377
          %v1454 = vpop.f32.mrb[0].mxu0
          %v1455 = vadd.f32 0.0, %v1454
          %v1456 = vpop.f32.mrb[0].mxu0
          %1457 = vmatprep.mubr.f32.mxu0 0.0
          %1458 = vmatmul.mubr.f32.gmra.mrb[0].mxu0 %v1380
          %v1459 = vpop.f32.mrb[0].mxu0
          %v1460 = vadd.f32 0.0, %v1459
          %v1461 = vpop.f32.mrb[0].mxu0
          %1462 = vmatprep.mubr.f32.mxu0 0.0
          %1463 = vmatmul.mubr.f32.gmra.mrb[0].mxu0 %v1383
          %v1464 = vpop.f32.mrb[0].mxu0
          %v1465 = vadd.f32 0.0, %v1464
          %v1466 = vpop.f32.mrb[0].mxu0
          %1467 = vmatprep.mubr.f32.mxu0 0.0
          %1468 = vmatmul.mubr.f32.gmra.mrb[0].mxu0 %v1386
          %v1469 = vpop.f32.mrb[0].mxu0
          %v1470 = vadd.f32 0.0, %v1469
          %v1471 = vpop.f32.mrb[0].mxu0
          %1472 = vdwg.mxu0
          %v1473 = vadd.f32 %v1367, %v1455
          %v1474 = vadd.f32 %v1368, %v1460
          %v1475 = vadd.f32 %v1369, %v1465
          %v1476 = vadd.f32 %v1370, %v1470
          %1477 = vst [vmem:[#allocation5] sm:$0xff] %v1473
          %1478 = vst [vmem:[#allocation5 + $0x8] sm:$0xff] %v1474
          %1479 = vst [vmem:[#allocation5 + $0x10] sm:$0xff] %v1475
          %1480 = vst [vmem:[#allocation5 + $0x18] sm:$0xff] %v1476
        $region52: #{tpu_custom_call.1} parent=39 // pred_fallthru
          _
        // Predicated region
        $region53: #{tpu_custom_call.1} parent=39 // pred_check
          _
        $region54: #{tpu_custom_call.1} parent=39 // pred_check_branch
          %1482 = sbr.rel (%p421) target = $region56
        $region55: #{tpu_custom_call.1} parent=39 // pred_region
          %v1483 = vld [vmem:[#allocation5] sm:$0xff]
          %v1484 = vld [vmem:[#allocation5 + $0x8] sm:$0xff]
          %v1485 = vld [vmem:[#allocation5 + $0x10] sm:$0xff]
          %v1486 = vld [vmem:[#allocation5 + $0x18] sm:$0xff]
          %v1487 = vld [vmem:[%s4] sm:$0x1]
          %v1489 = vlaneseq
          %v1490 = vshrl.u32 %v1489, 7
          %v1491 = vsub.s32 0, %v1490
          %v1492 = vrot.slane %v1487, %v1491
          %v1494 = vadd.f32 %v1483, %v1492
          %v1495 = vadd.f32 %v1484, %v1492
          %v1496 = vadd.f32 %v1485, %v1492
          %v1497 = vadd.f32 %v1486, %v1492
          %1498 = vst [vmem:[%s363] sm:$0xff] %v1494
          %1499 = vst [vmem:[%s363 + $0x8] sm:$0xff] %v1495
          %1500 = vst [vmem:[%s363 + $0x10] sm:$0xff] %v1496
          %1501 = vst [vmem:[%s363 + $0x18] sm:$0xff] %v1497
        $region56: #{tpu_custom_call.1} parent=39 // pred_fallthru
          _
        %s1502 = sand.u32 %s192, 1
        %s1503 = scalar_lea.sflag [#allocation7], %s1502
        %s1504 = sand.u32 %s192, 1
        %s1505 = smul.addr %s1504, 32
        %s1506 = scalar_lea.vmem [#allocation6], %s1505
        // Predicated region
        $region57: #{tpu_custom_call.1} parent=39 // pred_check
          %p1507 = pneg %p202
        $region58: #{tpu_custom_call.1} parent=39 // pred_check_branch
          %1509 = sbr.rel (%p1507) target = $region60
        $region59: #{tpu_custom_call.1} parent=39 // pred_region
          %s1510 = smul.u32 4, %s26
          %s1512 = ssub.s32 512, 512
          %1513 = vsyncadd %s1503, %s1512
          %s1514 = smul.addr %s25, 4
          %s1515 = sadd.s32 %s1510, %s1514
          %s1516 = smul.addr %s1515, 128
          %s1517 = scalar_lea.hbm %s5, %s1516
          %s1518 = sshll.u32 %s1506, 4
          %s1519 = int_to_ptr.vmem [resolvable:$true] %s1518
          %1524 = dma.vmem_to_hbm [thread:$0]  %s1519, 512, %s1517, %s1503, 128, 128, 8
        $region60: #{tpu_custom_call.1} parent=39 // pred_fallthru
          _
      $region40: #{tpu_custom_call.1} parent=5 // pred_fallthru
        _
      %p1525 = scmp.le.s32.totalorder 2, %s14
      // Predicated region
      $region61: #{tpu_custom_call.1} parent=5 // pred_check
        %p1526 = pneg %p1525
      $region62: #{tpu_custom_call.1} parent=5 // pred_check_branch
        %1528 = sbr.rel (%p1526) target = $region64
      $region63: #{tpu_custom_call.1} parent=5 // pred_region
        %s1529 = ssub.s32 %s14, 2
        // Predicated region
        $region65: #{tpu_custom_call.1} parent=63 // pred_check
          %p1530 = pneg %p208
        $region66: #{tpu_custom_call.1} parent=63 // pred_check_branch
          %1532 = sbr.rel (%p1530) target = $region68
        $region67: #{tpu_custom_call.1} parent=63 // pred_region
          %s1533 = sand.u32 %s193, 1
          %s1534 = scalar_lea.sflag [#allocation7], %s1533
          %s1535 = sand.u32 %s193, 1
          %s1536 = smul.addr %s1535, 32
          %s1537 = scalar_lea.vmem [#allocation6], %s1536
          %1538 = dma.done %s1534, 512
        $region68: #{tpu_custom_call.1} parent=63 // pred_fallthru
          _
      $region64: #{tpu_custom_call.1} parent=5 // pred_fallthru
        _
    $region6: #{tpu_custom_call.1} parent=1 // loop_footer
      %s18 = sadd.s32 1, %s14
    $region7: #{tpu_custom_call.1} parent=1 // loop_footer_branch
      %13 = sbr.rel target = $region3
    $region8: #{tpu_custom_call.1} parent=1 // loop_exit
      _
    %1539 = vsyncpa [#allocation7], 1
    %s1540 = scalar_lea.sflag [#allocation7], 1
    %1541 = vsyncpa %s1540, 1

</llo_original>
